<compile_context>
chip_gen: v7x
topology: tpu7x:2x2x1
jax: 0.10.0
libtpu: 0.0.40
codegen_flags: <defaults>
</compile_context>

<pallas_src>
import functools

import jax
import jax.numpy as jnp
from jax.experimental import pallas as pl
from jax.experimental.pallas import tpu as pltpu


def _round_up(x, m):
    return ((x + m - 1) // m) * m


# ----------------------------- Pallas kernel --------------------------------

def _conv_proj_fused_kernel(p_ref, wexp_ref, bexp_ref, w3_ref, b3_ref, o_ref):
    """One batch tile: logits = relu(patches @ Wexp + bexp) @ W3 + b3.

    p_ref   : (TB, K1*P)       im2col patches, column order k*P + p
    wexp_ref: (K1*P, OCP_pad)  conv weight, flatten folded in (columns = c*P + p), lane-padded
    bexp_ref: (1, OCP_pad)     conv bias broadcast over positions (same column order)
    w3_ref  : (OCP_pad, N_pad) projection weight (proj_w.T), class dim padded to 128
    b3_ref  : (1, N_pad)       projection bias, padded
    o_ref   : (TB, N_pad)      padded logits for this batch tile
    """
    # Conv (+ channel-major flatten, baked into the weight) as ONE MXU matmul.
    hf = jnp.dot(p_ref[...], wexp_ref[...], preferred_element_type=jnp.float32)
    # Bias + ReLU (ReLU is elementwise, so applying it pre-/post-flatten is identical).
    hf = jnp.maximum(hf + bexp_ref[...], 0.0)
    # Projection as ONE lane-dense MXU matmul; output lanes padded to 128.
    logits = jnp.dot(hf, w3_ref[...], preferred_element_type=jnp.float32) + b3_ref[...]
    o_ref[...] = logits.astype(o_ref.dtype)


# ----------------------------- glue (plain JAX, jitted) ----------------------

def _space_to_depth_patches(x, k, stride):
    """x: (B,C,H,W) -> (B, C*k*k*OH*OW), column index = (c*k*k + i*k + j)*P + (oh*OW + ow).

    stride == k (non-overlapping patches), so im2col is crop + reshape + one transpose."""
    assert stride == k, "space-to-depth im2col assumes stride == kernel (as in the module)"
    B, C, H, W = x.shape
    OH = (H - k) // stride + 1
    OW = (W - k) // stride + 1
    xc = x[:, :, :OH * k, :OW * k]
    t = xc.reshape(B, C, OH, k, OW, k).transpose(0, 1, 3, 5, 2, 4)  # (B, C, k, k, OH, OW)
    return t.reshape(B, C * k * k * OH * OW), OH, OW


def _fused_forward(x, wexp, bexp, w3, b3, *, k, stride, cls_num, batch_tile=None):
    B = x.shape[0]
    patches, _, _ = _space_to_depth_patches(x, k, stride)           # (B, K1*P)
    KP = patches.shape[1]
    if KP != wexp.shape[0]:
        raise ValueError(
            f"h_dim mismatch: input implies K1*OH*OW={KP}, weights built for {wexp.shape[0]}")
    OCPp = wexp.shape[1]
    Np = w3.shape[1]

    TB = B if batch_tile is None else batch_tile                    # one fat step by default
    if B % TB:
        raise ValueError("batch must be divisible by batch_tile")
    grid = (B // TB,)

    out = pl.pallas_call(
        _conv_proj_fused_kernel,
        out_shape=jax.ShapeDtypeStruct((B, Np), jnp.float32),
        grid=grid,
        in_specs=[
            pl.BlockSpec((TB, KP), lambda i: (i, 0)),
            # weights / biases: constant block index -> stay resident in VMEM
            pl.BlockSpec((wexp.shape[0], OCPp), lambda i: (0, 0)),
            pl.BlockSpec((1, OCPp), lambda i: (0, 0)),
            pl.BlockSpec((OCPp, Np), lambda i: (0, 0)),
            pl.BlockSpec((1, Np), lambda i: (0, 0)),
        ],
        out_specs=pl.BlockSpec((TB, Np), lambda i: (i, 0)),
        # batch tiles write disjoint outputs -> "parallel" (v7x megacore can split them)
        compiler_params=pltpu.CompilerParams(dimension_semantics=("parallel",)),
    )(patches, wexp, bexp, w3, b3)
    return out[:, :cls_num]


class ConvPallas:
    """Pallas implementation of Conv(in_channel, h_dim, cls_num)."""

    def __init__(self, in_channel, h_dim, cls_num, key):
        k0, k1, k2, k3 = jax.random.split(key, 4)
        self.k = 3
        self.stride = 3
        self.out_ch = 16
        self.h_dim = h_dim
        self.cls_num = cls_num

        # deterministic synthetic init (PyTorch-like scale)
        fan_conv = in_channel * self.k * self.k
        self.conv_w = jax.random.uniform(
            k0, (self.out_ch, in_channel, self.k, self.k), jnp.float32,
            minval=-1.0, maxval=1.0) / jnp.sqrt(fan_conv)
        self.conv_b = jax.random.uniform(
            k1, (self.out_ch,), jnp.float32, minval=-1.0, maxval=1.0) / jnp.sqrt(fan_conv)
        self.proj_w = jax.random.uniform(
            k2, (cls_num, h_dim), jnp.float32, minval=-1.0, maxval=1.0) / jnp.sqrt(h_dim)
        self.proj_b = jax.random.uniform(
            k3, (cls_num,), jnp.float32, minval=-1.0, maxval=1.0) / jnp.sqrt(h_dim)

        # --- static weight re-arrangements / paddings (done once; no per-call work) ---
        assert h_dim % self.out_ch == 0, "h_dim must equal out_ch * OH * OW"
        P = h_dim // self.out_ch                        # OH*OW
        K1 = in_channel * self.k * self.k
        OCP = self.out_ch * P                           # 400
        OCP_pad = _round_up(OCP, 128)                   # 512: lane-dense intermediate
        N_pad = _round_up(cls_num, 128)                 # 128: lane-dense output stores

        wc_r = self.conv_w.reshape(self.out_ch, K1)     # (OC, K1), k = c*9 + i*3 + j
        # Wexp[k*P + p, c*P + q] = wc_r[c, k] * (p == q): folds the channel-major flatten
        # into the conv weight so the kernel output columns are already PyTorch flat order.
        wexp_core = jnp.einsum('ck,pq->kpcq', wc_r, jnp.eye(P, dtype=jnp.float32))
        wexp_core = wexp_core.reshape(K1 * P, OCP)
        self.wexp = jnp.zeros((K1 * P, OCP_pad), jnp.float32).at[:, :OCP].set(wexp_core)
        self.bexp = jnp.zeros((1, OCP_pad), jnp.float32).at[:, :OCP].set(
            jnp.repeat(self.conv_b, P)[None, :])
        # Projection weight in flat order is just proj_w.T; zero-pad both dims.
        self.w3 = jnp.zeros((OCP_pad, N_pad), jnp.float32).at[:OCP, :cls_num].set(self.proj_w.T)
        self.b3 = jnp.zeros((1, N_pad), jnp.float32).at[:, :cls_num].set(self.proj_b[None, :])

        # jit the whole forward so the im2col glue fuses with the kernel dispatch
        self._fwd = jax.jit(functools.partial(
            _fused_forward, k=self.k, stride=self.stride, cls_num=cls_num))

    def __call__(self, x):
        return self._fwd(x, self.wexp, self.bexp, self.w3, self.b3)


# --------------------------------- main --------------------------------------

if __name__ == "__main__":
    key = jax.random.PRNGKey(0)
    kx, kp = jax.random.split(key)

    B, C, H, W = 2, 4, 16, 16
    OH = (H - 3) // 3 + 1          # 5
    OW = (W - 3) // 3 + 1          # 5
    h_dim = 16 * OH * OW           # 400
    cls_num = 10

    x = jax.random.normal(kx, (B, C, H, W), jnp.float32)

    model = ConvPallas(C, h_dim, cls_num, kp)
    out = jax.block_until_ready(model(x))

    # pure-JAX reference check (same semantics as the PyTorch module)
    conv_ref = jax.lax.conv_general_dilated(
        x, model.conv_w, window_strides=(3, 3), padding="VALID",
        dimension_numbers=("NCHW", "OIHW", "NCHW"),
        precision=jax.lax.Precision.HIGHEST)
    conv_ref = conv_ref + model.conv_b.reshape(1, -1, 1, 1)
    flat = jnp.maximum(conv_ref.reshape(B, -1), 0.0)
    ref = jnp.dot(flat, model.proj_w.T, precision=jax.lax.Precision.HIGHEST) + model.proj_b

    assert out.shape == (B, cls_num)
    assert jnp.allclose(out, ref, atol=1e-3, rtol=1e-3), float(jnp.max(jnp.abs(out - ref)))

    print("KERNEL_OK")
</pallas_src>

<mosaic_0001>
module attributes {stable_mosaic.version = 11 : i64} {
  func.func @_conv_proj_fused_kernel(%arg0: i32, %arg1: memref<2x900xf32, #tpu.memory_space<vmem>>, %arg2: memref<900x512xf32, #tpu.memory_space<vmem>>, %arg3: memref<1x512xf32, #tpu.memory_space<vmem>>, %arg4: memref<512x128xf32, #tpu.memory_space<vmem>>, %arg5: memref<1x128xf32, #tpu.memory_space<vmem>>, %arg6: memref<2x128xf32, #tpu.memory_space<vmem>>) attributes {dimension_semantics = [#tpu.dimension_semantics<parallel>], iteration_bounds = array<i64: 1>, scalar_prefetch = 0 : i64, scratch_operands = 0 : i64, tpu.core_type = #tpu.core_type<tc>, window_params = [{transform_indices = @transform_0, window_bounds = array<i64: 2, 900>}, {pipeline_mode = #tpu.pipeline_mode<synchronous>, transform_indices = @transform_1, window_bounds = array<i64: 900, 512>}, {pipeline_mode = #tpu.pipeline_mode<synchronous>, transform_indices = @transform_2, window_bounds = array<i64: 1, 512>}, {pipeline_mode = #tpu.pipeline_mode<synchronous>, transform_indices = @transform_3, window_bounds = array<i64: 512, 128>}, {pipeline_mode = #tpu.pipeline_mode<synchronous>, transform_indices = @transform_4, window_bounds = array<i64: 1, 128>}, {transform_indices = @transform_5, window_bounds = array<i64: 2, 128>}]} {
    %c0 = arith.constant 0 : index
    %c0_0 = arith.constant 0 : index
    %0 = vector.load %arg1[%c0, %c0_0] : memref<2x900xf32, #tpu.memory_space<vmem>>, vector<2x900xf32>
    %c0_1 = arith.constant 0 : index
    %c0_2 = arith.constant 0 : index
    %1 = vector.load %arg2[%c0_1, %c0_2] : memref<900x512xf32, #tpu.memory_space<vmem>>, vector<900x512xf32>
    %cst = arith.constant dense<0.000000e+00> : vector<2x512xf32>
    %2 = tpu.matmul %0, %1, %cst {dimension_numbers = #tpu.dot_dimension_numbers<[1], [0], [0], [1], [0, 0, 1, 1], [], []>} : vector<2x900xf32>, vector<900x512xf32>, vector<2x512xf32> -> vector<2x512xf32>
    %c0_3 = arith.constant 0 : index
    %c0_4 = arith.constant 0 : index
    %3 = vector.load %arg3[%c0_3, %c0_4] : memref<1x512xf32, #tpu.memory_space<vmem>>, vector<1x512xf32>
    %4 = vector.broadcast %3 : vector<1x512xf32> to vector<2x512xf32>
    %5 = arith.addf %2, %4 : vector<2x512xf32>
    %cst_5 = arith.constant 0.000000e+00 : f32
    %6 = vector.broadcast %cst_5 : f32 to vector<2x512xf32>
    %7 = arith.maximumf %5, %6 : vector<2x512xf32>
    %c0_6 = arith.constant 0 : index
    %c0_7 = arith.constant 0 : index
    %8 = vector.load %arg4[%c0_6, %c0_7] : memref<512x128xf32, #tpu.memory_space<vmem>>, vector<512x128xf32>
    %cst_8 = arith.constant dense<0.000000e+00> : vector<2x128xf32>
    %9 = tpu.matmul %7, %8, %cst_8 {dimension_numbers = #tpu.dot_dimension_numbers<[1], [0], [0], [1], [0, 0, 1, 1], [], []>} : vector<2x512xf32>, vector<512x128xf32>, vector<2x128xf32> -> vector<2x128xf32>
    %c0_9 = arith.constant 0 : index
    %c0_10 = arith.constant 0 : index
    %10 = vector.load %arg5[%c0_9, %c0_10] : memref<1x128xf32, #tpu.memory_space<vmem>>, vector<1x128xf32>
    %11 = vector.broadcast %10 : vector<1x128xf32> to vector<2x128xf32>
    %12 = arith.addf %9, %11 : vector<2x128xf32>
    %c0_11 = arith.constant 0 : index
    %c0_12 = arith.constant 0 : index
    %13 = vector.load %arg6[%c0_11, %c0_12] : memref<2x128xf32, #tpu.memory_space<vmem>>, vector<2x128xf32>
    tpu.vector_store %arg6[%c0_11, %c0_12], %12 {strides = array<i32>} : memref<2x128xf32, #tpu.memory_space<vmem>>, vector<2x128xf32>,
    return
  }
  func.func @transform_0(%arg0: i32) -> (i32, i32) {
    %c0_i32 = arith.constant 0 : i32
    %c0_i32_0 = arith.constant 0 : i32
    return %arg0, %c0_i32 : i32, i32
  }
  func.func @transform_1(%arg0: i32) -> (i32, i32) {
    %c0_i32 = arith.constant 0 : i32
    %c0_i32_0 = arith.constant 0 : i32
    %c0_i32_1 = arith.constant 0 : i32
    return %c0_i32, %c0_i32_0 : i32, i32
  }
  func.func @transform_2(%arg0: i32) -> (i32, i32) {
    %c0_i32 = arith.constant 0 : i32
    %c0_i32_0 = arith.constant 0 : i32
    %c0_i32_1 = arith.constant 0 : i32
    return %c0_i32, %c0_i32_0 : i32, i32
  }
  func.func @transform_3(%arg0: i32) -> (i32, i32) {
    %c0_i32 = arith.constant 0 : i32
    %c0_i32_0 = arith.constant 0 : i32
    %c0_i32_1 = arith.constant 0 : i32
    return %c0_i32, %c0_i32_0 : i32, i32
  }
  func.func @transform_4(%arg0: i32) -> (i32, i32) {
    %c0_i32 = arith.constant 0 : i32
    %c0_i32_0 = arith.constant 0 : i32
    %c0_i32_1 = arith.constant 0 : i32
    return %c0_i32, %c0_i32_0 : i32, i32
  }
  func.func @transform_5(%arg0: i32) -> (i32, i32) {
    %c0_i32 = arith.constant 0 : i32
    %c0_i32_0 = arith.constant 0 : i32
    return %arg0, %c0_i32 : i32, i32
  }
}

</mosaic_0001>

<llo_original>
// kernel: _fused_forward.1
$region0: #{_fused_forward.1}
  #allocation0 [shape = 'u32[]', space=smem, size = 0x4, offset = 0x4, fixed_abs, tag = 'smem constant byte address 0x4 - core index']
  #allocation1 [shape = 'u32[144,128]{1,0:T(1,128)}', space=vmem, size = 0x12000, scoped, tag = 'internal scratch']
  %s0 = inlined_call_operand.vmem [shape: f32[2,900], index: 0, kind: input, shape index: {}]
  %s1 = inlined_call_operand.hbm [shape: f32[900,512], index: 1, kind: input, shape index: {}]
  %s2 = inlined_call_operand.hbm [shape: f32[1,512], index: 2, kind: input, shape index: {}]
  %s3 = inlined_call_operand.hbm [shape: f32[512,128], index: 3, kind: input, shape index: {}]
  %s4 = inlined_call_operand.hbm [shape: f32[1,128], index: 4, kind: input, shape index: {}]
  %s5 = inlined_call_operand.hbm [shape: f32[2,128], index: 5, kind: output, shape index: {}]
  %s6 = sld [smem:[#allocation0]]
  $region46: #{_fused_forward.1} parent=0
    _
  %s8 = ssub.s32 1, %s6
  %s9 = scalar_select 0, %s8, %s6
  $region1: #{_fused_forward.1} parent=0
    #allocation2 [shape = 'u8[1851392]{0}', space=vmem, size = 0x1c4000, scoped, tag = 'input window, operand 1, single buffered']
    #allocation3 [shape = 's32[1]{0}', space=sflag, size = 0x4, scoped, tag = 'scoped memory for _fused_forward.1']
    #allocation4 [shape = 's32[1]{0}', space=sflag, size = 0x4, scoped, tag = 'scoped memory for _fused_forward.1']
    #allocation5 [shape = 'u8[2048]{0}', space=vmem, size = 0x800, scoped, tag = 'input window, operand 2, single buffered']
    #allocation6 [shape = 's32[1]{0}', space=sflag, size = 0x4, scoped, tag = 'scoped memory for _fused_forward.1']
    #allocation7 [shape = 'u8[262144]{0}', space=vmem, size = 0x40000, scoped, tag = 'input window, operand 3, single buffered']
    #allocation8 [shape = 'u8[512]{0}', space=vmem, size = 0x400, scoped, tag = 'input window, operand 4, single buffered']
    #allocation9 [shape = 's32[1]{0}', space=sflag, size = 0x4, scoped, tag = 'scoped memory for _fused_forward.1']
    #allocation10 [shape = 'u8[1024]{0}', space=vmem, size = 0x400, scoped, tag = 'output window, operand 0, single buffered']
    %10 = vsyncpa [#allocation3], 0
    %11 = vsyncpa [#allocation6], 0
    %12 = vsyncpa [#allocation9], 0
    %13 = vsyncpa [#allocation4], 0
    // Predicated region
    $region2: #{_fused_forward.1} parent=1 // pred_check
      _
    $region3: #{_fused_forward.1} parent=1 // pred_check_branch
      %15 = sbr.rel (0) target = $region5
    $region4: #{_fused_forward.1} parent=1 // pred_region
      _
    $region5: #{_fused_forward.1} parent=1 // pred_fallthru
      _
    // Predicated region
    $region6: #{_fused_forward.1} parent=1 // pred_check
      _
    $region7: #{_fused_forward.1} parent=1 // pred_check_branch
      %17 = sbr.rel (0) target = $region9
    $region8: #{_fused_forward.1} parent=1 // pred_region
      %s19 = ssub.s32 57856, 57856
      %20 = vsyncadd [#allocation3], %s19
      %s21 = sshll.u32 [#allocation2], 4
      %s22 = int_to_ptr.vmem [resolvable:$true] %s21
      %27 = dma.hbm_to_vmem [thread:$0]  %s1, 57856, %s22, [#allocation3], 512, 512, 32
    $region9: #{_fused_forward.1} parent=1 // pred_fallthru
      _
    // Predicated region
    $region10: #{_fused_forward.1} parent=1 // pred_check
      _
    $region11: #{_fused_forward.1} parent=1 // pred_check_branch
      %29 = sbr.rel (0) target = $region13
    $region12: #{_fused_forward.1} parent=1 // pred_region
      %s31 = ssub.s32 64, 64
      %32 = vsyncadd [#allocation6], %s31
      %s34 = sshll.u32 [#allocation5], 4
      %s35 = int_to_ptr.vmem [resolvable:$true] %s34
      %37 = dma.hbm_to_vmem [thread:$0]  %s2, 64, %s35, [#allocation6]
    $region13: #{_fused_forward.1} parent=1 // pred_fallthru
      _
    // Predicated region
    $region14: #{_fused_forward.1} parent=1 // pred_check
      _
    $region15: #{_fused_forward.1} parent=1 // pred_check_branch
      %39 = sbr.rel (0) target = $region17
    $region16: #{_fused_forward.1} parent=1 // pred_region
      %s41 = ssub.s32 8192, 8192
      %42 = vsyncadd [#allocation6], %s41
      %s43 = sshll.u32 [#allocation7], 4
      %s44 = int_to_ptr.vmem [resolvable:$true] %s43
      %49 = dma.hbm_to_vmem [thread:$0]  %s3, 8192, %s44, [#allocation6], 128, 128, 8
    $region17: #{_fused_forward.1} parent=1 // pred_fallthru
      _
    // Predicated region
    $region18: #{_fused_forward.1} parent=1 // pred_check
      _
    $region19: #{_fused_forward.1} parent=1 // pred_check_branch
      %51 = sbr.rel (0) target = $region21
    $region20: #{_fused_forward.1} parent=1 // pred_region
      %s53 = ssub.s32 16, 16
      %54 = vsyncadd [#allocation9], %s53
      %s56 = sshll.u32 [#allocation8], 4
      %s57 = int_to_ptr.vmem [resolvable:$true] %s56
      %59 = dma.hbm_to_vmem [thread:$0]  %s4, 16, %s57, [#allocation9]
    $region21: #{_fused_forward.1} parent=1 // pred_fallthru
      _
    // Predicated region
    $region22: #{_fused_forward.1} parent=1 // pred_check
      _
    $region23: #{_fused_forward.1} parent=1 // pred_check_branch
      %61 = sbr.rel (0) target = $region25
    $region24: #{_fused_forward.1} parent=1 // pred_region
      %62 = dma.done [#allocation3], 57856
    $region25: #{_fused_forward.1} parent=1 // pred_fallthru
      _
    // Predicated region
    $region26: #{_fused_forward.1} parent=1 // pred_check
      _
    $region27: #{_fused_forward.1} parent=1 // pred_check_branch
      %64 = sbr.rel (0) target = $region29
    $region28: #{_fused_forward.1} parent=1 // pred_region
      %65 = dma.done [#allocation6], 64
    $region29: #{_fused_forward.1} parent=1 // pred_fallthru
      _
    // Predicated region
    $region30: #{_fused_forward.1} parent=1 // pred_check
      _
    $region31: #{_fused_forward.1} parent=1 // pred_check_branch
      %67 = sbr.rel (0) target = $region33
    $region32: #{_fused_forward.1} parent=1 // pred_region
      %68 = dma.done [#allocation6], 8192
    $region33: #{_fused_forward.1} parent=1 // pred_fallthru
      _
    // Predicated region
    $region34: #{_fused_forward.1} parent=1 // pred_check
      _
    $region35: #{_fused_forward.1} parent=1 // pred_check_branch
      %70 = sbr.rel (0) target = $region37
    $region36: #{_fused_forward.1} parent=1 // pred_region
      %71 = dma.done [#allocation9], 16
    $region37: #{_fused_forward.1} parent=1 // pred_fallthru
      _
    %v72 = vld [vmem:[%s0] sm:$0xff]
    %v73 = vld [vmem:[%s0 + $0x8] sm:$0xff]
    %v74 = vld [vmem:[#allocation2] sm:$0xff]
    %v75 = vld [vmem:[#allocation2 + $0x8] sm:$0xff]
    %v76 = vld [vmem:[#allocation2 + $0x10] sm:$0xff]
    %v77 = vld [vmem:[#allocation2 + $0x18] sm:$0xff]
    %v78 = vld [vmem:[#allocation2 + $0x20] sm:$0xff]
    %v79 = vld [vmem:[#allocation2 + $0x28] sm:$0xff]
    %v80 = vld [vmem:[#allocation2 + $0x30] sm:$0xff]
    %v81 = vld [vmem:[#allocation2 + $0x38] sm:$0xff]
    %v82 = vld [vmem:[#allocation2 + $0x40] sm:$0xff]
    %v83 = vld [vmem:[#allocation2 + $0x48] sm:$0xff]
    %v84 = vld [vmem:[#allocation2 + $0x50] sm:$0xff]
    %v85 = vld [vmem:[#allocation2 + $0x58] sm:$0xff]
    %v86 = vld [vmem:[#allocation2 + $0x60] sm:$0xff]
    %v87 = vld [vmem:[#allocation2 + $0x68] sm:$0xff]
    %v88 = vld [vmem:[#allocation2 + $0x70] sm:$0xff]
    %v89 = vld [vmem:[#allocation2 + $0x78] sm:$0xff]
    %v90 = vld [vmem:[#allocation2 + $0x80] sm:$0xff]
    %v91 = vld [vmem:[#allocation2 + $0x88] sm:$0xff]
    %v92 = vld [vmem:[#allocation2 + $0x90] sm:$0xff]
    %v93 = vld [vmem:[#allocation2 + $0x98] sm:$0xff]
    %v94 = vld [vmem:[#allocation2 + $0xa0] sm:$0xff]
    %v95 = vld [vmem:[#allocation2 + $0xa8] sm:$0xff]
    %v96 = vld [vmem:[#allocation2 + $0xb0] sm:$0xff]
    %v97 = vld [vmem:[#allocation2 + $0xb8] sm:$0xff]
    %v98 = vld [vmem:[#allocation2 + $0xc0] sm:$0xff]
    %v99 = vld [vmem:[#allocation2 + $0xc8] sm:$0xff]
    %v100 = vld [vmem:[#allocation2 + $0xd0] sm:$0xff]
    %v101 = vld [vmem:[#allocation2 + $0xd8] sm:$0xff]
    %v102 = vld [vmem:[#allocation2 + $0xe0] sm:$0xff]
    %v103 = vld [vmem:[#allocation2 + $0xe8] sm:$0xff]
    %v104 = vld [vmem:[#allocation2 + $0xf0] sm:$0xff]
    %v105 = vld [vmem:[#allocation2 + $0xf8] sm:$0xff]
    %v106 = vld [vmem:[#allocation2 + $0x100] sm:$0xff]
    %v107 = vld [vmem:[#allocation2 + $0x108] sm:$0xff]
    %v108 = vld [vmem:[#allocation2 + $0x110] sm:$0xff]
    %v109 = vld [vmem:[#allocation2 + $0x118] sm:$0xff]
    %v110 = vld [vmem:[#allocation2 + $0x120] sm:$0xff]
    %v111 = vld [vmem:[#allocation2 + $0x128] sm:$0xff]
    %v112 = vld [vmem:[#allocation2 + $0x130] sm:$0xff]
    %v113 = vld [vmem:[#allocation2 + $0x138] sm:$0xff]
    %v114 = vld [vmem:[#allocation2 + $0x140] sm:$0xff]
    %v115 = vld [vmem:[#allocation2 + $0x148] sm:$0xff]
    %v116 = vld [vmem:[#allocation2 + $0x150] sm:$0xff]
    %v117 = vld [vmem:[#allocation2 + $0x158] sm:$0xff]
    %v118 = vld [vmem:[#allocation2 + $0x160] sm:$0xff]
    %v119 = vld [vmem:[#allocation2 + $0x168] sm:$0xff]
    %v120 = vld [vmem:[#allocation2 + $0x170] sm:$0xff]
    %v121 = vld [vmem:[#allocation2 + $0x178] sm:$0xff]
    %v122 = vld [vmem:[#allocation2 + $0x180] sm:$0xff]
    %v123 = vld [vmem:[#allocation2 + $0x188] sm:$0xff]
    %v124 = vld [vmem:[#allocation2 + $0x190] sm:$0xff]
    %v125 = vld [vmem:[#allocation2 + $0x198] sm:$0xff]
    %v126 = vld [vmem:[#allocation2 + $0x1a0] sm:$0xff]
    %v127 = vld [vmem:[#allocation2 + $0x1a8] sm:$0xff]
    %v128 = vld [vmem:[#allocation2 + $0x1b0] sm:$0xff]
    %v129 = vld [vmem:[#allocation2 + $0x1b8] sm:$0xff]
    %v130 = vld [vmem:[#allocation2 + $0x1c0] sm:$0xff]
    %v131 = vld [vmem:[#allocation2 + $0x1c8] sm:$0xff]
    %v132 = vld [vmem:[#allocation2 + $0x1d0] sm:$0xff]
    %v133 = vld [vmem:[#allocation2 + $0x1d8] sm:$0xff]
    %v134 = vld [vmem:[#allocation2 + $0x1e0] sm:$0xff]
    %v135 = vld [vmem:[#allocation2 + $0x1e8] sm:$0xff]
    %v136 = vld [vmem:[#allocation2 + $0x1f0] sm:$0xff]
    %v137 = vld [vmem:[#allocation2 + $0x1f8] sm:$0xff]
    %v138 = vld [vmem:[#allocation2 + $0x200] sm:$0xff]
    %v139 = vld [vmem:[#allocation2 + $0x208] sm:$0xff]
    %v140 = vld [vmem:[#allocation2 + $0x210] sm:$0xff]
    %v141 = vld [vmem:[#allocation2 + $0x218] sm:$0xff]
    %v142 = vld [vmem:[#allocation2 + $0x220] sm:$0xff]
    %v143 = vld [vmem:[#allocation2 + $0x228] sm:$0xff]
    %v144 = vld [vmem:[#allocation2 + $0x230] sm:$0xff]
    %v145 = vld [vmem:[#allocation2 + $0x238] sm:$0xff]
    %v146 = vld [vmem:[#allocation2 + $0x240] sm:$0xff]
    %v147 = vld [vmem:[#allocation2 + $0x248] sm:$0xff]
    %v148 = vld [vmem:[#allocation2 + $0x250] sm:$0xff]
    %v149 = vld [vmem:[#allocation2 + $0x258] sm:$0xff]
    %v150 = vld [vmem:[#allocation2 + $0x260] sm:$0xff]
    %v151 = vld [vmem:[#allocation2 + $0x268] sm:$0xff]
    %v152 = vld [vmem:[#allocation2 + $0x270] sm:$0xff]
    %v153 = vld [vmem:[#allocation2 + $0x278] sm:$0xff]
    %v154 = vld [vmem:[#allocation2 + $0x280] sm:$0xff]
    %v155 = vld [vmem:[#allocation2 + $0x288] sm:$0xff]
    %v156 = vld [vmem:[#allocation2 + $0x290] sm:$0xff]
    %v157 = vld [vmem:[#allocation2 + $0x298] sm:$0xff]
    %v158 = vld [vmem:[#allocation2 + $0x2a0] sm:$0xff]
    %v159 = vld [vmem:[#allocation2 + $0x2a8] sm:$0xff]
    %v160 = vld [vmem:[#allocation2 + $0x2b0] sm:$0xff]
    %v161 = vld [vmem:[#allocation2 + $0x2b8] sm:$0xff]
    %v162 = vld [vmem:[#allocation2 + $0x2c0] sm:$0xff]
    %v163 = vld [vmem:[#allocation2 + $0x2c8] sm:$0xff]
    %v164 = vld [vmem:[#allocation2 + $0x2d0] sm:$0xff]
    %v165 = vld [vmem:[#allocation2 + $0x2d8] sm:$0xff]
    %v166 = vld [vmem:[#allocation2 + $0x2e0] sm:$0xff]
    %v167 = vld [vmem:[#allocation2 + $0x2e8] sm:$0xff]
    %v168 = vld [vmem:[#allocation2 + $0x2f0] sm:$0xff]
    %v169 = vld [vmem:[#allocation2 + $0x2f8] sm:$0xff]
    %v170 = vld [vmem:[#allocation2 + $0x300] sm:$0xff]
    %v171 = vld [vmem:[#allocation2 + $0x308] sm:$0xff]
    %v172 = vld [vmem:[#allocation2 + $0x310] sm:$0xff]
    %v173 = vld [vmem:[#allocation2 + $0x318] sm:$0xff]
    %v174 = vld [vmem:[#allocation2 + $0x320] sm:$0xff]
    %v175 = vld [vmem:[#allocation2 + $0x328] sm:$0xff]
    %v176 = vld [vmem:[#allocation2 + $0x330] sm:$0xff]
    %v177 = vld [vmem:[#allocation2 + $0x338] sm:$0xff]
    %v178 = vld [vmem:[#allocation2 + $0x340] sm:$0xff]
    %v179 = vld [vmem:[#allocation2 + $0x348] sm:$0xff]
    %v180 = vld [vmem:[#allocation2 + $0x350] sm:$0xff]
    %v181 = vld [vmem:[#allocation2 + $0x358] sm:$0xff]
    %v182 = vld [vmem:[#allocation2 + $0x360] sm:$0xff]
    %v183 = vld [vmem:[#allocation2 + $0x368] sm:$0xff]
    %v184 = vld [vmem:[#allocation2 + $0x370] sm:$0xff]
    %v185 = vld [vmem:[#allocation2 + $0x378] sm:$0xff]
    %v186 = vld [vmem:[#allocation2 + $0x380] sm:$0xff]
    %v187 = vld [vmem:[#allocation2 + $0x388] sm:$0xff]
    %v188 = vld [vmem:[#allocation2 + $0x390] sm:$0xff]
    %v189 = vld [vmem:[#allocation2 + $0x398] sm:$0xff]
    %v190 = vld [vmem:[#allocation2 + $0x3a0] sm:$0xff]
    %v191 = vld [vmem:[#allocation2 + $0x3a8] sm:$0xff]
    %v192 = vld [vmem:[#allocation2 + $0x3b0] sm:$0xff]
    %v193 = vld [vmem:[#allocation2 + $0x3b8] sm:$0xff]
    %v194 = vld [vmem:[#allocation2 + $0x3c0] sm:$0xff]
    %v195 = vld [vmem:[#allocation2 + $0x3c8] sm:$0xff]
    %v196 = vld [vmem:[#allocation2 + $0x3d0] sm:$0xff]
    %v197 = vld [vmem:[#allocation2 + $0x3d8] sm:$0xff]
    %v198 = vld [vmem:[#allocation2 + $0x3e0] sm:$0xff]
    %v199 = vld [vmem:[#allocation2 + $0x3e8] sm:$0xff]
    %v200 = vld [vmem:[#allocation2 + $0x3f0] sm:$0xff]
    %v201 = vld [vmem:[#allocation2 + $0x3f8] sm:$0xff]
    %v202 = vld [vmem:[#allocation2 + $0x400] sm:$0xff]
    %v203 = vld [vmem:[#allocation2 + $0x408] sm:$0xff]
    %v204 = vld [vmem:[#allocation2 + $0x410] sm:$0xff]
    %v205 = vld [vmem:[#allocation2 + $0x418] sm:$0xff]
    %v206 = vld [vmem:[#allocation2 + $0x420] sm:$0xff]
    %v207 = vld [vmem:[#allocation2 + $0x428] sm:$0xff]
    %v208 = vld [vmem:[#allocation2 + $0x430] sm:$0xff]
    %v209 = vld [vmem:[#allocation2 + $0x438] sm:$0xff]
    %v210 = vld [vmem:[#allocation2 + $0x440] sm:$0xff]
    %v211 = vld [vmem:[#allocation2 + $0x448] sm:$0xff]
    %v212 = vld [vmem:[#allocation2 + $0x450] sm:$0xff]
    %v213 = vld [vmem:[#allocation2 + $0x458] sm:$0xff]
    %v214 = vld [vmem:[#allocation2 + $0x460] sm:$0xff]
    %v215 = vld [vmem:[#allocation2 + $0x468] sm:$0xff]
    %v216 = vld [vmem:[#allocation2 + $0x470] sm:$0xff]
    %v217 = vld [vmem:[#allocation2 + $0x478] sm:$0xff]
    %v218 = vld [vmem:[#allocation2 + $0x480] sm:$0xff]
    %v219 = vld [vmem:[#allocation2 + $0x488] sm:$0xff]
    %v220 = vld [vmem:[#allocation2 + $0x490] sm:$0xff]
    %v221 = vld [vmem:[#allocation2 + $0x498] sm:$0xff]
    %v222 = vld [vmem:[#allocation2 + $0x4a0] sm:$0xff]
    %v223 = vld [vmem:[#allocation2 + $0x4a8] sm:$0xff]
    %v224 = vld [vmem:[#allocation2 + $0x4b0] sm:$0xff]
    %v225 = vld [vmem:[#allocation2 + $0x4b8] sm:$0xff]
    %v226 = vld [vmem:[#allocation2 + $0x4c0] sm:$0xff]
    %v227 = vld [vmem:[#allocation2 + $0x4c8] sm:$0xff]
    %v228 = vld [vmem:[#allocation2 + $0x4d0] sm:$0xff]
    %v229 = vld [vmem:[#allocation2 + $0x4d8] sm:$0xff]
    %v230 = vld [vmem:[#allocation2 + $0x4e0] sm:$0xff]
    %v231 = vld [vmem:[#allocation2 + $0x4e8] sm:$0xff]
    %v232 = vld [vmem:[#allocation2 + $0x4f0] sm:$0xff]
    %v233 = vld [vmem:[#allocation2 + $0x4f8] sm:$0xff]
    %v234 = vld [vmem:[#allocation2 + $0x500] sm:$0xff]
    %v235 = vld [vmem:[#allocation2 + $0x508] sm:$0xff]
    %v236 = vld [vmem:[#allocation2 + $0x510] sm:$0xff]
    %v237 = vld [vmem:[#allocation2 + $0x518] sm:$0xff]
    %v238 = vld [vmem:[#allocation2 + $0x520] sm:$0xff]
    %v239 = vld [vmem:[#allocation2 + $0x528] sm:$0xff]
    %v240 = vld [vmem:[#allocation2 + $0x530] sm:$0xff]
    %v241 = vld [vmem:[#allocation2 + $0x538] sm:$0xff]
    %v242 = vld [vmem:[#allocation2 + $0x540] sm:$0xff]
    %v243 = vld [vmem:[#allocation2 + $0x548] sm:$0xff]
    %v244 = vld [vmem:[#allocation2 + $0x550] sm:$0xff]
    %v245 = vld [vmem:[#allocation2 + $0x558] sm:$0xff]
    %v246 = vld [vmem:[#allocation2 + $0x560] sm:$0xff]
    %v247 = vld [vmem:[#allocation2 + $0x568] sm:$0xff]
    %v248 = vld [vmem:[#allocation2 + $0x570] sm:$0xff]
    %v249 = vld [vmem:[#allocation2 + $0x578] sm:$0xff]
    %v250 = vld [vmem:[#allocation2 + $0x580] sm:$0xff]
    %v251 = vld [vmem:[#allocation2 + $0x588] sm:$0xff]
    %v252 = vld [vmem:[#allocation2 + $0x590] sm:$0xff]
    %v253 = vld [vmem:[#allocation2 + $0x598] sm:$0xff]
    %v254 = vld [vmem:[#allocation2 + $0x5a0] sm:$0xff]
    %v255 = vld [vmem:[#allocation2 + $0x5a8] sm:$0xff]
    %v256 = vld [vmem:[#allocation2 + $0x5b0] sm:$0xff]
    %v257 = vld [vmem:[#allocation2 + $0x5b8] sm:$0xff]
    %v258 = vld [vmem:[#allocation2 + $0x5c0] sm:$0xff]
    %v259 = vld [vmem:[#allocation2 + $0x5c8] sm:$0xff]
    %v260 = vld [vmem:[#allocation2 + $0x5d0] sm:$0xff]
    %v261 = vld [vmem:[#allocation2 + $0x5d8] sm:$0xff]
    %v262 = vld [vmem:[#allocation2 + $0x5e0] sm:$0xff]
    %v263 = vld [vmem:[#allocation2 + $0x5e8] sm:$0xff]
    %v264 = vld [vmem:[#allocation2 + $0x5f0] sm:$0xff]
    %v265 = vld [vmem:[#allocation2 + $0x5f8] sm:$0xff]
    %v266 = vld [vmem:[#allocation2 + $0x600] sm:$0xff]
    %v267 = vld [vmem:[#allocation2 + $0x608] sm:$0xff]
    %v268 = vld [vmem:[#allocation2 + $0x610] sm:$0xff]
    %v269 = vld [vmem:[#allocation2 + $0x618] sm:$0xff]
    %v270 = vld [vmem:[#allocation2 + $0x620] sm:$0xff]
    %v271 = vld [vmem:[#allocation2 + $0x628] sm:$0xff]
    %v272 = vld [vmem:[#allocation2 + $0x630] sm:$0xff]
    %v273 = vld [vmem:[#allocation2 + $0x638] sm:$0xff]
    %v274 = vld [vmem:[#allocation2 + $0x640] sm:$0xff]
    %v275 = vld [vmem:[#allocation2 + $0x648] sm:$0xff]
    %v276 = vld [vmem:[#allocation2 + $0x650] sm:$0xff]
    %v277 = vld [vmem:[#allocation2 + $0x658] sm:$0xff]
    %v278 = vld [vmem:[#allocation2 + $0x660] sm:$0xff]
    %v279 = vld [vmem:[#allocation2 + $0x668] sm:$0xff]
    %v280 = vld [vmem:[#allocation2 + $0x670] sm:$0xff]
    %v281 = vld [vmem:[#allocation2 + $0x678] sm:$0xff]
    %v282 = vld [vmem:[#allocation2 + $0x680] sm:$0xff]
    %v283 = vld [vmem:[#allocation2 + $0x688] sm:$0xff]
    %v284 = vld [vmem:[#allocation2 + $0x690] sm:$0xff]
    %v285 = vld [vmem:[#allocation2 + $0x698] sm:$0xff]
    %v286 = vld [vmem:[#allocation2 + $0x6a0] sm:$0xff]
    %v287 = vld [vmem:[#allocation2 + $0x6a8] sm:$0xff]
    %v288 = vld [vmem:[#allocation2 + $0x6b0] sm:$0xff]
    %v289 = vld [vmem:[#allocation2 + $0x6b8] sm:$0xff]
    %v290 = vld [vmem:[#allocation2 + $0x6c0] sm:$0xff]
    %v291 = vld [vmem:[#allocation2 + $0x6c8] sm:$0xff]
    %v292 = vld [vmem:[#allocation2 + $0x6d0] sm:$0xff]
    %v293 = vld [vmem:[#allocation2 + $0x6d8] sm:$0xff]
    %v294 = vld [vmem:[#allocation2 + $0x6e0] sm:$0xff]
    %v295 = vld [vmem:[#allocation2 + $0x6e8] sm:$0xff]
    %v296 = vld [vmem:[#allocation2 + $0x6f0] sm:$0xff]
    %v297 = vld [vmem:[#allocation2 + $0x6f8] sm:$0xff]
    %v298 = vld [vmem:[#allocation2 + $0x700] sm:$0xff]
    %v299 = vld [vmem:[#allocation2 + $0x708] sm:$0xff]
    %v300 = vld [vmem:[#allocation2 + $0x710] sm:$0xff]
    %v301 = vld [vmem:[#allocation2 + $0x718] sm:$0xff]
    %v302 = vld [vmem:[#allocation2 + $0x720] sm:$0xff]
    %v303 = vld [vmem:[#allocation2 + $0x728] sm:$0xff]
    %v304 = vld [vmem:[#allocation2 + $0x730] sm:$0xff]
    %v305 = vld [vmem:[#allocation2 + $0x738] sm:$0xff]
    %v306 = vld [vmem:[#allocation2 + $0x740] sm:$0xff]
    %v307 = vld [vmem:[#allocation2 + $0x748] sm:$0xff]
    %v308 = vld [vmem:[#allocation2 + $0x750] sm:$0xff]
    %v309 = vld [vmem:[#allocation2 + $0x758] sm:$0xff]
    %v310 = vld [vmem:[#allocation2 + $0x760] sm:$0xff]
    %v311 = vld [vmem:[#allocation2 + $0x768] sm:$0xff]
    %v312 = vld [vmem:[#allocation2 + $0x770] sm:$0xff]
    %v313 = vld [vmem:[#allocation2 + $0x778] sm:$0xff]
    %v314 = vld [vmem:[#allocation2 + $0x780] sm:$0xff]
    %v315 = vld [vmem:[#allocation2 + $0x788] sm:$0xff]
    %v316 = vld [vmem:[#allocation2 + $0x790] sm:$0xff]
    %v317 = vld [vmem:[#allocation2 + $0x798] sm:$0xff]
    %v318 = vld [vmem:[#allocation2 + $0x7a0] sm:$0xff]
    %v319 = vld [vmem:[#allocation2 + $0x7a8] sm:$0xff]
    %v320 = vld [vmem:[#allocation2 + $0x7b0] sm:$0xff]
    %v321 = vld [vmem:[#allocation2 + $0x7b8] sm:$0xff]
    %v322 = vld [vmem:[#allocation2 + $0x7c0] sm:$0xff]
    %v323 = vld [vmem:[#allocation2 + $0x7c8] sm:$0xff]
    %v324 = vld [vmem:[#allocation2 + $0x7d0] sm:$0xff]
    %v325 = vld [vmem:[#allocation2 + $0x7d8] sm:$0xff]
    %v326 = vld [vmem:[#allocation2 + $0x7e0] sm:$0xff]
    %v327 = vld [vmem:[#allocation2 + $0x7e8] sm:$0xff]
    %v328 = vld [vmem:[#allocation2 + $0x7f0] sm:$0xff]
    %v329 = vld [vmem:[#allocation2 + $0x7f8] sm:$0xff]
    %v330 = vld [vmem:[#allocation2 + $0x800] sm:$0xff]
    %v331 = vld [vmem:[#allocation2 + $0x808] sm:$0xff]
    %v332 = vld [vmem:[#allocation2 + $0x810] sm:$0xff]
    %v333 = vld [vmem:[#allocation2 + $0x818] sm:$0xff]
    %v334 = vld [vmem:[#allocation2 + $0x820] sm:$0xff]
    %v335 = vld [vmem:[#allocation2 + $0x828] sm:$0xff]
    %v336 = vld [vmem:[#allocation2 + $0x830] sm:$0xff]
    %v337 = vld [vmem:[#allocation2 + $0x838] sm:$0xff]
    %v338 = vld [vmem:[#allocation2 + $0x840] sm:$0xff]
    %v339 = vld [vmem:[#allocation2 + $0x848] sm:$0xff]
    %v340 = vld [vmem:[#allocation2 + $0x850] sm:$0xff]
    %v341 = vld [vmem:[#allocation2 + $0x858] sm:$0xff]
    %v342 = vld [vmem:[#allocation2 + $0x860] sm:$0xff]
    %v343 = vld [vmem:[#allocation2 + $0x868] sm:$0xff]
    %v344 = vld [vmem:[#allocation2 + $0x870] sm:$0xff]
    %v345 = vld [vmem:[#allocation2 + $0x878] sm:$0xff]
    %v346 = vld [vmem:[#allocation2 + $0x880] sm:$0xff]
    %v347 = vld [vmem:[#allocation2 + $0x888] sm:$0xff]
    %v348 = vld [vmem:[#allocation2 + $0x890] sm:$0xff]
    %v349 = vld [vmem:[#allocation2 + $0x898] sm:$0xff]
    %v350 = vld [vmem:[#allocation2 + $0x8a0] sm:$0xff]
    %v351 = vld [vmem:[#allocation2 + $0x8a8] sm:$0xff]
    %v352 = vld [vmem:[#allocation2 + $0x8b0] sm:$0xff]
    %v353 = vld [vmem:[#allocation2 + $0x8b8] sm:$0xff]
    %v354 = vld [vmem:[#allocation2 + $0x8c0] sm:$0xff]
    %v355 = vld [vmem:[#allocation2 + $0x8c8] sm:$0xff]
    %v356 = vld [vmem:[#allocation2 + $0x8d0] sm:$0xff]
    %v357 = vld [vmem:[#allocation2 + $0x8d8] sm:$0xff]
    %v358 = vld [vmem:[#allocation2 + $0x8e0] sm:$0xff]
    %v359 = vld [vmem:[#allocation2 + $0x8e8] sm:$0xff]
    %v360 = vld [vmem:[#allocation2 + $0x8f0] sm:$0xff]
    %v361 = vld [vmem:[#allocation2 + $0x8f8] sm:$0xff]
    %v362 = vld [vmem:[#allocation2 + $0x900] sm:$0xff]
    %v363 = vld [vmem:[#allocation2 + $0x908] sm:$0xff]
    %v364 = vld [vmem:[#allocation2 + $0x910] sm:$0xff]
    %v365 = vld [vmem:[#allocation2 + $0x918] sm:$0xff]
    %v366 = vld [vmem:[#allocation2 + $0x920] sm:$0xff]
    %v367 = vld [vmem:[#allocation2 + $0x928] sm:$0xff]
    %v368 = vld [vmem:[#allocation2 + $0x930] sm:$0xff]
    %v369 = vld [vmem:[#allocation2 + $0x938] sm:$0xff]
    %v370 = vld [vmem:[#allocation2 + $0x940] sm:$0xff]
    %v371 = vld [vmem:[#allocation2 + $0x948] sm:$0xff]
    %v372 = vld [vmem:[#allocation2 + $0x950] sm:$0xff]
    %v373 = vld [vmem:[#allocation2 + $0x958] sm:$0xff]
    %v374 = vld [vmem:[#allocation2 + $0x960] sm:$0xff]
    %v375 = vld [vmem:[#allocation2 + $0x968] sm:$0xff]
    %v376 = vld [vmem:[#allocation2 + $0x970] sm:$0xff]
    %v377 = vld [vmem:[#allocation2 + $0x978] sm:$0xff]
    %v378 = vld [vmem:[#allocation2 + $0x980] sm:$0xff]
    %v379 = vld [vmem:[#allocation2 + $0x988] sm:$0xff]
    %v380 = vld [vmem:[#allocation2 + $0x990] sm:$0xff]
    %v381 = vld [vmem:[#allocation2 + $0x998] sm:$0xff]
    %v382 = vld [vmem:[#allocation2 + $0x9a0] sm:$0xff]
    %v383 = vld [vmem:[#allocation2 + $0x9a8] sm:$0xff]
    %v384 = vld [vmem:[#allocation2 + $0x9b0] sm:$0xff]
    %v385 = vld [vmem:[#allocation2 + $0x9b8] sm:$0xff]
    %v386 = vld [vmem:[#allocation2 + $0x9c0] sm:$0xff]
    %v387 = vld [vmem:[#allocation2 + $0x9c8] sm:$0xff]
    %v388 = vld [vmem:[#allocation2 + $0x9d0] sm:$0xff]
    %v389 = vld [vmem:[#allocation2 + $0x9d8] sm:$0xff]
    %v390 = vld [vmem:[#allocation2 + $0x9e0] sm:$0xff]
    %v391 = vld [vmem:[#allocation2 + $0x9e8] sm:$0xff]
    %v392 = vld [vmem:[#allocation2 + $0x9f0] sm:$0xff]
    %v393 = vld [vmem:[#allocation2 + $0x9f8] sm:$0xff]
    %v394 = vld [vmem:[#allocation2 + $0xa00] sm:$0xff]
    %v395 = vld [vmem:[#allocation2 + $0xa08] sm:$0xff]
    %v396 = vld [vmem:[#allocation2 + $0xa10] sm:$0xff]
    %v397 = vld [vmem:[#allocation2 + $0xa18] sm:$0xff]
    %v398 = vld [vmem:[#allocation2 + $0xa20] sm:$0xff]
    %v399 = vld [vmem:[#allocation2 + $0xa28] sm:$0xff]
    %v400 = vld [vmem:[#allocation2 + $0xa30] sm:$0xff]
    %v401 = vld [vmem:[#allocation2 + $0xa38] sm:$0xff]
    %v402 = vld [vmem:[#allocation2 + $0xa40] sm:$0xff]
    %v403 = vld [vmem:[#allocation2 + $0xa48] sm:$0xff]
    %v404 = vld [vmem:[#allocation2 + $0xa50] sm:$0xff]
    %v405 = vld [vmem:[#allocation2 + $0xa58] sm:$0xff]
    %v406 = vld [vmem:[#allocation2 + $0xa60] sm:$0xff]
    %v407 = vld [vmem:[#allocation2 + $0xa68] sm:$0xff]
    %v408 = vld [vmem:[#allocation2 + $0xa70] sm:$0xff]
    %v409 = vld [vmem:[#allocation2 + $0xa78] sm:$0xff]
    %v410 = vld [vmem:[#allocation2 + $0xa80] sm:$0xff]
    %v411 = vld [vmem:[#allocation2 + $0xa88] sm:$0xff]
    %v412 = vld [vmem:[#allocation2 + $0xa90] sm:$0xff]
    %v413 = vld [vmem:[#allocation2 + $0xa98] sm:$0xff]
    %v414 = vld [vmem:[#allocation2 + $0xaa0] sm:$0xff]
    %v415 = vld [vmem:[#allocation2 + $0xaa8] sm:$0xff]
    %v416 = vld [vmem:[#allocation2 + $0xab0] sm:$0xff]
    %v417 = vld [vmem:[#allocation2 + $0xab8] sm:$0xff]
    %v418 = vld [vmem:[#allocation2 + $0xac0] sm:$0xff]
    %v419 = vld [vmem:[#allocation2 + $0xac8] sm:$0xff]
    %v420 = vld [vmem:[#allocation2 + $0xad0] sm:$0xff]
    %v421 = vld [vmem:[#allocation2 + $0xad8] sm:$0xff]
    %v422 = vld [vmem:[#allocation2 + $0xae0] sm:$0xff]
    %v423 = vld [vmem:[#allocation2 + $0xae8] sm:$0xff]
    %v424 = vld [vmem:[#allocation2 + $0xaf0] sm:$0xff]
    %v425 = vld [vmem:[#allocation2 + $0xaf8] sm:$0xff]
    %v426 = vld [vmem:[#allocation2 + $0xb00] sm:$0xff]
    %v427 = vld [vmem:[#allocation2 + $0xb08] sm:$0xff]
    %v428 = vld [vmem:[#allocation2 + $0xb10] sm:$0xff]
    %v429 = vld [vmem:[#allocation2 + $0xb18] sm:$0xff]
    %v430 = vld [vmem:[#allocation2 + $0xb20] sm:$0xff]
    %v431 = vld [vmem:[#allocation2 + $0xb28] sm:$0xff]
    %v432 = vld [vmem:[#allocation2 + $0xb30] sm:$0xff]
    %v433 = vld [vmem:[#allocation2 + $0xb38] sm:$0xff]
    %v434 = vld [vmem:[#allocation2 + $0xb40] sm:$0xff]
    %v435 = vld [vmem:[#allocation2 + $0xb48] sm:$0xff]
    %v436 = vld [vmem:[#allocation2 + $0xb50] sm:$0xff]
    %v437 = vld [vmem:[#allocation2 + $0xb58] sm:$0xff]
    %v438 = vld [vmem:[#allocation2 + $0xb60] sm:$0xff]
    %v439 = vld [vmem:[#allocation2 + $0xb68] sm:$0xff]
    %v440 = vld [vmem:[#allocation2 + $0xb70] sm:$0xff]
    %v441 = vld [vmem:[#allocation2 + $0xb78] sm:$0xff]
    %v442 = vld [vmem:[#allocation2 + $0xb80] sm:$0xff]
    %v443 = vld [vmem:[#allocation2 + $0xb88] sm:$0xff]
    %v444 = vld [vmem:[#allocation2 + $0xb90] sm:$0xff]
    %v445 = vld [vmem:[#allocation2 + $0xb98] sm:$0xff]
    %v446 = vld [vmem:[#allocation2 + $0xba0] sm:$0xff]
    %v447 = vld [vmem:[#allocation2 + $0xba8] sm:$0xff]
    %v448 = vld [vmem:[#allocation2 + $0xbb0] sm:$0xff]
    %v449 = vld [vmem:[#allocation2 + $0xbb8] sm:$0xff]
    %v450 = vld [vmem:[#allocation2 + $0xbc0] sm:$0xff]
    %v451 = vld [vmem:[#allocation2 + $0xbc8] sm:$0xff]
    %v452 = vld [vmem:[#allocation2 + $0xbd0] sm:$0xff]
    %v453 = vld [vmem:[#allocation2 + $0xbd8] sm:$0xff]
    %v454 = vld [vmem:[#allocation2 + $0xbe0] sm:$0xff]
    %v455 = vld [vmem:[#allocation2 + $0xbe8] sm:$0xff]
    %v456 = vld [vmem:[#allocation2 + $0xbf0] sm:$0xff]
    %v457 = vld [vmem:[#allocation2 + $0xbf8] sm:$0xff]
    %v458 = vld [vmem:[#allocation2 + $0xc00] sm:$0xff]
    %v459 = vld [vmem:[#allocation2 + $0xc08] sm:$0xff]
    %v460 = vld [vmem:[#allocation2 + $0xc10] sm:$0xff]
    %v461 = vld [vmem:[#allocation2 + $0xc18] sm:$0xff]
    %v462 = vld [vmem:[#allocation2 + $0xc20] sm:$0xff]
    %v463 = vld [vmem:[#allocation2 + $0xc28] sm:$0xff]
    %v464 = vld [vmem:[#allocation2 + $0xc30] sm:$0xff]
    %v465 = vld [vmem:[#allocation2 + $0xc38] sm:$0xff]
    %v466 = vld [vmem:[#allocation2 + $0xc40] sm:$0xff]
    %v467 = vld [vmem:[#allocation2 + $0xc48] sm:$0xff]
    %v468 = vld [vmem:[#allocation2 + $0xc50] sm:$0xff]
    %v469 = vld [vmem:[#allocation2 + $0xc58] sm:$0xff]
    %v470 = vld [vmem:[#allocation2 + $0xc60] sm:$0xff]
    %v471 = vld [vmem:[#allocation2 + $0xc68] sm:$0xff]
    %v472 = vld [vmem:[#allocation2 + $0xc70] sm:$0xff]
    %v473 = vld [vmem:[#allocation2 + $0xc78] sm:$0xff]
    %v474 = vld [vmem:[#allocation2 + $0xc80] sm:$0xff]
    %v475 = vld [vmem:[#allocation2 + $0xc88] sm:$0xff]
    %v476 = vld [vmem:[#allocation2 + $0xc90] sm:$0xff]
    %v477 = vld [vmem:[#allocation2 + $0xc98] sm:$0xff]
    %v478 = vld [vmem:[#allocation2 + $0xca0] sm:$0xff]
    %v479 = vld [vmem:[#allocation2 + $0xca8] sm:$0xff]
    %v480 = vld [vmem:[#allocation2 + $0xcb0] sm:$0xff]
    %v481 = vld [vmem:[#allocation2 + $0xcb8] sm:$0xff]
    %v482 = vld [vmem:[#allocation2 + $0xcc0] sm:$0xff]
    %v483 = vld [vmem:[#allocation2 + $0xcc8] sm:$0xff]
    %v484 = vld [vmem:[#allocation2 + $0xcd0] sm:$0xff]
    %v485 = vld [vmem:[#allocation2 + $0xcd8] sm:$0xff]
    %v486 = vld [vmem:[#allocation2 + $0xce0] sm:$0xff]
    %v487 = vld [vmem:[#allocation2 + $0xce8] sm:$0xff]
    %v488 = vld [vmem:[#allocation2 + $0xcf0] sm:$0xff]
    %v489 = vld [vmem:[#allocation2 + $0xcf8] sm:$0xff]
    %v490 = vld [vmem:[#allocation2 + $0xd00] sm:$0xff]
    %v491 = vld [vmem:[#allocation2 + $0xd08] sm:$0xff]
    %v492 = vld [vmem:[#allocation2 + $0xd10] sm:$0xff]
    %v493 = vld [vmem:[#allocation2 + $0xd18] sm:$0xff]
    %v494 = vld [vmem:[#allocation2 + $0xd20] sm:$0xff]
    %v495 = vld [vmem:[#allocation2 + $0xd28] sm:$0xff]
    %v496 = vld [vmem:[#allocation2 + $0xd30] sm:$0xff]
    %v497 = vld [vmem:[#allocation2 + $0xd38] sm:$0xff]
    %v498 = vld [vmem:[#allocation2 + $0xd40] sm:$0xff]
    %v499 = vld [vmem:[#allocation2 + $0xd48] sm:$0xff]
    %v500 = vld [vmem:[#allocation2 + $0xd50] sm:$0xff]
    %v501 = vld [vmem:[#allocation2 + $0xd58] sm:$0xff]
    %v502 = vld [vmem:[#allocation2 + $0xd60] sm:$0xff]
    %v503 = vld [vmem:[#allocation2 + $0xd68] sm:$0xff]
    %v504 = vld [vmem:[#allocation2 + $0xd70] sm:$0xff]
    %v505 = vld [vmem:[#allocation2 + $0xd78] sm:$0xff]
    %v506 = vld [vmem:[#allocation2 + $0xd80] sm:$0xff]
    %v507 = vld [vmem:[#allocation2 + $0xd88] sm:$0xff]
    %v508 = vld [vmem:[#allocation2 + $0xd90] sm:$0xff]
    %v509 = vld [vmem:[#allocation2 + $0xd98] sm:$0xff]
    %v510 = vld [vmem:[#allocation2 + $0xda0] sm:$0xff]
    %v511 = vld [vmem:[#allocation2 + $0xda8] sm:$0xff]
    %v512 = vld [vmem:[#allocation2 + $0xdb0] sm:$0xff]
    %v513 = vld [vmem:[#allocation2 + $0xdb8] sm:$0xff]
    %v514 = vld [vmem:[#allocation2 + $0xdc0] sm:$0xff]
    %v515 = vld [vmem:[#allocation2 + $0xdc8] sm:$0xff]
    %v516 = vld [vmem:[#allocation2 + $0xdd0] sm:$0xff]
    %v517 = vld [vmem:[#allocation2 + $0xdd8] sm:$0xff]
    %v518 = vld [vmem:[#allocation2 + $0xde0] sm:$0xff]
    %v519 = vld [vmem:[#allocation2 + $0xde8] sm:$0xff]
    %v520 = vld [vmem:[#allocation2 + $0xdf0] sm:$0xff]
    %v521 = vld [vmem:[#allocation2 + $0xdf8] sm:$0xff]
    %v522 = vld [vmem:[#allocation2 + $0xe00] sm:$0xf]
    %v523 = vld [vmem:[#allocation2 + $0xe08] sm:$0xf]
    %v524 = vld [vmem:[#allocation2 + $0xe10] sm:$0xf]
    %v525 = vld [vmem:[#allocation2 + $0xe18] sm:$0xf]
    %v526 = vld [vmem:[#allocation5] sm:$0xf]
    %v528 = vlaneseq
    %v529 = vshrl.u32 %v528, 7
    %v530 = vsub.s32 0, %v529
    %v531 = vrot.slane %v526, %v530
    %v532 = vlaneseq
    %v533 = vshrl.u32 %v532, 7
    %v534 = vsub.s32 1, %v533
    %v535 = vrot.slane %v526, %v534
    %v536 = vlaneseq
    %v537 = vshrl.u32 %v536, 7
    %v538 = vsub.s32 2, %v537
    %v539 = vrot.slane %v526, %v538
    %v540 = vlaneseq
    %v541 = vshrl.u32 %v540, 7
    %v542 = vsub.s32 3, %v541
    %v543 = vrot.slane %v526, %v542
    %v550 = vcombine.high %v72, %v72
    %v552 = vunpack.c.l.s4 1983009808
    %v553 = vunpack.c.0.s8 %v552
    %v554 = vlaneseq
    %v555 = vshrl.u32 %v554, 7
    %v556 = vsub.s32 %v553, %v555
    %v557 = vrot.slane %v72, %v556
    %v559 = vunpack.c.l.s4 1983009808
    %v560 = vunpack.c.0.s8 %v559
    %v561 = vlaneseq
    %v562 = vshrl.u32 %v561, 7
    %v563 = vsub.s32 %v560, %v562
    %v564 = vrot.slane %v550, %v563
    %v565 = vcombine.high %v557, %v557
    %v566 = vcombine.high %v564, %v564
    %v567 = vcombine.high %v73, %v73
    %v569 = vunpack.c.l.s4 1983009808
    %v570 = vunpack.c.0.s8 %v569
    %v571 = vlaneseq
    %v572 = vshrl.u32 %v571, 7
    %v573 = vsub.s32 %v570, %v572
    %v574 = vrot.slane %v73, %v573
    %v576 = vunpack.c.l.s4 1983009808
    %v577 = vunpack.c.0.s8 %v576
    %v578 = vlaneseq
    %v579 = vshrl.u32 %v578, 7
    %v580 = vsub.s32 %v577, %v579
    %v581 = vrot.slane %v567, %v580
    %v582 = vcombine.high %v574, %v574
    %v583 = vcombine.high %v581, %v581
    %vm591 = vcmask 31744
    %v592 = vsel %vm591, %v583, 0
    %vm594 = vcmask 1043456
    %v596 = vsel %vm594, %v522, 0
    %v599 = vsel %vm594, %v523, 0
    %v602 = vsel %vm594, %v524, 0
    %v605 = vsel %vm594, %v525, 0
    %607 = vmatprep.subr.mxu0 %v75
    %608 = vmatpush1.msra.mxu0 %v74
    %609 = vmatprep.subr.mxu0 %v79
    %610 = vmatpush1.msra.mxu0 %v78
    %611 = vmatprep.subr.mxu0 %v83
    %612 = vmatpush1.msra.mxu0 %v82
    %613 = vmatprep.subr.mxu0 %v87
    %614 = vmatpush1.msra.mxu0 %v86
    %615 = vmatprep.subr.mxu0 %v91
    %616 = vmatpush1.msra.mxu0 %v90
    %617 = vmatprep.subr.mxu0 %v95
    %618 = vmatpush1.msra.mxu0 %v94
    %619 = vmatprep.subr.mxu0 %v99
    %620 = vmatpush1.msra.mxu0 %v98
    %621 = vmatprep.subr.mxu0 %v103
    %622 = vmatpush1.msra.mxu0 %v102
    %623 = vmatprep.subr.mxu0 %v107
    %624 = vmatpush1.msra.mxu0 %v106
    %625 = vmatprep.subr.mxu0 %v111
    %626 = vmatpush1.msra.mxu0 %v110
    %627 = vmatprep.subr.mxu0 %v115
    %628 = vmatpush1.msra.mxu0 %v114
    %629 = vmatprep.subr.mxu0 %v119
    %630 = vmatpush1.msra.mxu0 %v118
    %631 = vmatprep.subr.mxu0 %v123
    %632 = vmatpush1.msra.mxu0 %v122
    %633 = vmatprep.subr.mxu0 %v127
    %634 = vmatpush1.msra.mxu0 %v126
    %635 = vmatprep.subr.mxu0 %v131
    %636 = vmatpush1.msra.mxu0 %v130
    %637 = vmatprep.subr.mxu0 %v135
    %638 = vmatpush1.msra.mxu0 %v134
    %639 = vmatprep.subr.mxu0 %v139
    %640 = vmatpush1.msra.mxu0 %v138
    %641 = vmatprep.subr.mxu0 %v143
    %642 = vmatpush1.msra.mxu0 %v142
    %643 = vmatprep.subr.mxu0 %v147
    %644 = vmatpush1.msra.mxu0 %v146
    %645 = vmatprep.subr.mxu0 %v151
    %646 = vmatpush1.msra.mxu0 %v150
    %647 = vmatprep.subr.mxu0 %v155
    %648 = vmatpush1.msra.mxu0 %v154
    %649 = vmatprep.subr.mxu0 %v159
    %650 = vmatpush1.msra.mxu0 %v158
    %651 = vmatprep.subr.mxu0 %v163
    %652 = vmatpush1.msra.mxu0 %v162
    %653 = vmatprep.subr.mxu0 %v167
    %654 = vmatpush1.msra.mxu0 %v166
    %655 = vmatprep.subr.mxu0 %v171
    %656 = vmatpush1.msra.mxu0 %v170
    %657 = vmatprep.subr.mxu0 %v175
    %658 = vmatpush1.msra.mxu0 %v174
    %659 = vmatprep.subr.mxu0 %v179
    %660 = vmatpush1.msra.mxu0 %v178
    %661 = vmatprep.subr.mxu0 %v183
    %662 = vmatpush1.msra.mxu0 %v182
    %663 = vmatprep.subr.mxu0 %v187
    %664 = vmatpush1.msra.mxu0 %v186
    %665 = vmatprep.subr.mxu0 %v191
    %666 = vmatpush1.msra.mxu0 %v190
    %667 = vmatprep.subr.mxu0 %v195
    %668 = vmatpush1.msra.mxu0 %v194
    %669 = vmatprep.subr.mxu0 %v199
    %670 = vmatpush1.msra.mxu0 %v198
    %671 = vmatprep.mubr.f32.mxu0 %v565
    %672 = vmatmul.mubr.f32.gmra.mrb[0].mxu0 %v557
    %v673 = vpop.f32.mrb[0].mxu0
    %v674 = vadd.f32 %v531, %v673
    %v675 = vpop.f32.mrb[0].mxu0
    %v676 = vadd.f32 %v535, %v675
    %677 = vdwg.mxu0
    %678 = vmatprep.subr.mxu0 %v203
    %679 = vmatpush1.msra.mxu0 %v202
    %680 = vmatprep.subr.mxu0 %v207
    %681 = vmatpush1.msra.mxu0 %v206
    %682 = vmatprep.subr.mxu0 %v211
    %683 = vmatpush1.msra.mxu0 %v210
    %684 = vmatprep.subr.mxu0 %v215
    %685 = vmatpush1.msra.mxu0 %v214
    %686 = vmatprep.subr.mxu0 %v219
    %687 = vmatpush1.msra.mxu0 %v218
    %688 = vmatprep.subr.mxu0 %v223
    %689 = vmatpush1.msra.mxu0 %v222
    %690 = vmatprep.subr.mxu0 %v227
    %691 = vmatpush1.msra.mxu0 %v226
    %692 = vmatprep.subr.mxu0 %v231
    %693 = vmatpush1.msra.mxu0 %v230
    %694 = vmatprep.subr.mxu0 %v235
    %695 = vmatpush1.msra.mxu0 %v234
    %696 = vmatprep.subr.mxu0 %v239
    %697 = vmatpush1.msra.mxu0 %v238
    %698 = vmatprep.subr.mxu0 %v243
    %699 = vmatpush1.msra.mxu0 %v242
    %700 = vmatprep.subr.mxu0 %v247
    %701 = vmatpush1.msra.mxu0 %v246
    %702 = vmatprep.subr.mxu0 %v251
    %703 = vmatpush1.msra.mxu0 %v250
    %704 = vmatprep.subr.mxu0 %v255
    %705 = vmatpush1.msra.mxu0 %v254
    %706 = vmatprep.subr.mxu0 %v259
    %707 = vmatpush1.msra.mxu0 %v258
    %708 = vmatprep.subr.mxu0 %v263
    %709 = vmatpush1.msra.mxu0 %v262
    %710 = vmatprep.subr.mxu0 %v267
    %711 = vmatpush1.msra.mxu0 %v266
    %712 = vmatprep.subr.mxu0 %v271
    %713 = vmatpush1.msra.mxu0 %v270
    %714 = vmatprep.subr.mxu0 %v275
    %715 = vmatpush1.msra.mxu0 %v274
    %716 = vmatprep.subr.mxu0 %v279
    %717 = vmatpush1.msra.mxu0 %v278
    %718 = vmatprep.subr.mxu0 %v283
    %719 = vmatpush1.msra.mxu0 %v282
    %720 = vmatprep.subr.mxu0 %v287
    %721 = vmatpush1.msra.mxu0 %v286
    %722 = vmatprep.subr.mxu0 %v291
    %723 = vmatpush1.msra.mxu0 %v290
    %724 = vmatprep.subr.mxu0 %v295
    %725 = vmatpush1.msra.mxu0 %v294
    %726 = vmatprep.subr.mxu0 %v299
    %727 = vmatpush1.msra.mxu0 %v298
    %728 = vmatprep.subr.mxu0 %v303
    %729 = vmatpush1.msra.mxu0 %v302
    %730 = vmatprep.subr.mxu0 %v307
    %731 = vmatpush1.msra.mxu0 %v306
    %732 = vmatprep.subr.mxu0 %v311
    %733 = vmatpush1.msra.mxu0 %v310
    %734 = vmatprep.subr.mxu0 %v315
    %735 = vmatpush1.msra.mxu0 %v314
    %736 = vmatprep.subr.mxu0 %v319
    %737 = vmatpush1.msra.mxu0 %v318
    %738 = vmatprep.subr.mxu0 %v323
    %739 = vmatpush1.msra.mxu0 %v322
    %740 = vmatprep.subr.mxu0 %v327
    %741 = vmatpush1.msra.mxu0 %v326
    %742 = vmatprep.mubr.f32.mxu0 %v566
    %743 = vmatmul.mubr.f32.gmra.mrb[0].mxu0 %v564
    %v744 = vpop.f32.mrb[0].mxu0
    %v745 = vadd.f32 %v674, %v744
    %v746 = vpop.f32.mrb[0].mxu0
    %v747 = vadd.f32 %v676, %v746
    %748 = vdwg.mxu0
    %749 = vmatprep.subr.mxu0 %v331
    %750 = vmatpush1.msra.mxu0 %v330
    %751 = vmatprep.subr.mxu0 %v335
    %752 = vmatpush1.msra.mxu0 %v334
    %753 = vmatprep.subr.mxu0 %v339
    %754 = vmatpush1.msra.mxu0 %v338
    %755 = vmatprep.subr.mxu0 %v343
    %756 = vmatpush1.msra.mxu0 %v342
    %757 = vmatprep.subr.mxu0 %v347
    %758 = vmatpush1.msra.mxu0 %v346
    %759 = vmatprep.subr.mxu0 %v351
    %760 = vmatpush1.msra.mxu0 %v350
    %761 = vmatprep.subr.mxu0 %v355
    %762 = vmatpush1.msra.mxu0 %v354
    %763 = vmatprep.subr.mxu0 %v359
    %764 = vmatpush1.msra.mxu0 %v358
    %765 = vmatprep.subr.mxu0 %v363
    %766 = vmatpush1.msra.mxu0 %v362
    %767 = vmatprep.subr.mxu0 %v367
    %768 = vmatpush1.msra.mxu0 %v366
    %769 = vmatprep.subr.mxu0 %v371
    %770 = vmatpush1.msra.mxu0 %v370
    %771 = vmatprep.subr.mxu0 %v375
    %772 = vmatpush1.msra.mxu0 %v374
    %773 = vmatprep.subr.mxu0 %v379
    %774 = vmatpush1.msra.mxu0 %v378
    %775 = vmatprep.subr.mxu0 %v383
    %776 = vmatpush1.msra.mxu0 %v382
    %777 = vmatprep.subr.mxu0 %v387
    %778 = vmatpush1.msra.mxu0 %v386
    %779 = vmatprep.subr.mxu0 %v391
    %780 = vmatpush1.msra.mxu0 %v390
    %781 = vmatprep.subr.mxu0 %v395
    %782 = vmatpush1.msra.mxu0 %v394
    %783 = vmatprep.subr.mxu0 %v399
    %784 = vmatpush1.msra.mxu0 %v398
    %785 = vmatprep.subr.mxu0 %v403
    %786 = vmatpush1.msra.mxu0 %v402
    %787 = vmatprep.subr.mxu0 %v407
    %788 = vmatpush1.msra.mxu0 %v406
    %789 = vmatprep.subr.mxu0 %v411
    %790 = vmatpush1.msra.mxu0 %v410
    %791 = vmatprep.subr.mxu0 %v415
    %792 = vmatpush1.msra.mxu0 %v414
    %793 = vmatprep.subr.mxu0 %v419
    %794 = vmatpush1.msra.mxu0 %v418
    %795 = vmatprep.subr.mxu0 %v423
    %796 = vmatpush1.msra.mxu0 %v422
    %797 = vmatprep.subr.mxu0 %v427
    %798 = vmatpush1.msra.mxu0 %v426
    %799 = vmatprep.subr.mxu0 %v431
    %800 = vmatpush1.msra.mxu0 %v430
    %801 = vmatprep.subr.mxu0 %v435
    %802 = vmatpush1.msra.mxu0 %v434
    %803 = vmatprep.subr.mxu0 %v439
    %804 = vmatpush1.msra.mxu0 %v438
    %805 = vmatprep.subr.mxu0 %v443
    %806 = vmatpush1.msra.mxu0 %v442
    %807 = vmatprep.subr.mxu0 %v447
    %808 = vmatpush1.msra.mxu0 %v446
    %809 = vmatprep.subr.mxu0 %v451
    %810 = vmatpush1.msra.mxu0 %v450
    %811 = vmatprep.subr.mxu0 %v455
    %812 = vmatpush1.msra.mxu0 %v454
    %813 = vmatprep.mubr.f32.mxu0 %v582
    %814 = vmatmul.mubr.f32.gmra.mrb[0].mxu0 %v574
    %v815 = vpop.f32.mrb[0].mxu0
    %v816 = vadd.f32 %v745, %v815
    %v817 = vpop.f32.mrb[0].mxu0
    %v818 = vadd.f32 %v747, %v817
    %819 = vdwg.mxu0
    %820 = vmatprep.subr.mxu0 %v459
    %821 = vmatpush1.msra.mxu0 %v458
    %822 = vmatprep.subr.mxu0 %v463
    %823 = vmatpush1.msra.mxu0 %v462
    %824 = vmatprep.subr.mxu0 %v467
    %825 = vmatpush1.msra.mxu0 %v466
    %826 = vmatprep.subr.mxu0 %v471
    %827 = vmatpush1.msra.mxu0 %v470
    %828 = vmatprep.subr.mxu0 %v475
    %829 = vmatpush1.msra.mxu0 %v474
    %830 = vmatprep.subr.mxu0 %v479
    %831 = vmatpush1.msra.mxu0 %v478
    %832 = vmatprep.subr.mxu0 %v483
    %833 = vmatpush1.msra.mxu0 %v482
    %834 = vmatprep.subr.mxu0 %v487
    %835 = vmatpush1.msra.mxu0 %v486
    %836 = vmatprep.subr.mxu0 %v491
    %837 = vmatpush1.msra.mxu0 %v490
    %838 = vmatprep.subr.mxu0 %v495
    %839 = vmatpush1.msra.mxu0 %v494
    %840 = vmatprep.subr.mxu0 %v499
    %841 = vmatpush1.msra.mxu0 %v498
    %842 = vmatprep.subr.mxu0 %v503
    %843 = vmatpush1.msra.mxu0 %v502
    %844 = vmatprep.subr.mxu0 %v507
    %845 = vmatpush1.msra.mxu0 %v506
    %846 = vmatprep.subr.mxu0 %v511
    %847 = vmatpush1.msra.mxu0 %v510
    %848 = vmatprep.subr.mxu0 %v515
    %849 = vmatpush1.msra.mxu0 %v514
    %850 = vmatprep.subr.mxu0 %v519
    %851 = vmatpush1.msra.mxu0 %v518
    %852 = vmatprep.subr.mxu0 %v599
    %853 = vmatpush1.msra.mxu0 %v596
    %854 = vmatprep.subr.mxu0 0.0
    %855 = vmatpush1.msra.mxu0 0.0
    %856 = vmatprep.subr.mxu0 0.0
    %857 = vmatpush1.msra.mxu0 0.0
    %858 = vmatprep.subr.mxu0 0.0
    %859 = vmatpush1.msra.mxu0 0.0
    %860 = vmatprep.subr.mxu0 0.0
    %861 = vmatpush1.msra.mxu0 0.0
    %862 = vmatprep.subr.mxu0 0.0
    %863 = vmatpush1.msra.mxu0 0.0
    %864 = vmatprep.subr.mxu0 0.0
    %865 = vmatpush1.msra.mxu0 0.0
    %866 = vmatprep.subr.mxu0 0.0
    %867 = vmatpush1.msra.mxu0 0.0
    %868 = vmatprep.subr.mxu0 0.0
    %869 = vmatpush1.msra.mxu0 0.0
    %870 = vmatprep.subr.mxu0 0.0
    %871 = vmatpush1.msra.mxu0 0.0
    %872 = vmatprep.subr.mxu0 0.0
    %873 = vmatpush1.msra.mxu0 0.0
    %874 = vmatprep.subr.mxu0 0.0
    %875 = vmatpush1.msra.mxu0 0.0
    %876 = vmatprep.subr.mxu0 0.0
    %877 = vmatpush1.msra.mxu0 0.0
    %878 = vmatprep.subr.mxu0 0.0
    %879 = vmatpush1.msra.mxu0 0.0
    %880 = vmatprep.subr.mxu0 0.0
    %881 = vmatpush1.msra.mxu0 0.0
    %882 = vmatprep.subr.mxu0 0.0
    %883 = vmatpush1.msra.mxu0 0.0
    %884 = vmatprep.mubr.f32.mxu0 %v592
    %885 = vmatmul.mubr.f32.gmra.mrb[0].mxu0 %v581
    %v886 = vpop.f32.mrb[0].mxu0
    %v887 = vadd.f32 %v816, %v886
    %v888 = vpop.f32.mrb[0].mxu0
    %v889 = vadd.f32 %v818, %v888
    %890 = vdwg.mxu0
    %891 = vmatprep.subr.mxu0 %v77
    %892 = vmatpush1.msra.mxu0 %v76
    %893 = vmatprep.subr.mxu0 %v81
    %894 = vmatpush1.msra.mxu0 %v80
    %895 = vmatprep.subr.mxu0 %v85
    %896 = vmatpush1.msra.mxu0 %v84
    %897 = vmatprep.subr.mxu0 %v89
    %898 = vmatpush1.msra.mxu0 %v88
    %899 = vmatprep.subr.mxu0 %v93
    %900 = vmatpush1.msra.mxu0 %v92
    %901 = vmatprep.subr.mxu0 %v97
    %902 = vmatpush1.msra.mxu0 %v96
    %903 = vmatprep.subr.mxu0 %v101
    %904 = vmatpush1.msra.mxu0 %v100
    %905 = vmatprep.subr.mxu0 %v105
    %906 = vmatpush1.msra.mxu0 %v104
    %907 = vmatprep.subr.mxu0 %v109
    %908 = vmatpush1.msra.mxu0 %v108
    %909 = vmatprep.subr.mxu0 %v113
    %910 = vmatpush1.msra.mxu0 %v112
    %911 = vmatprep.subr.mxu0 %v117
    %912 = vmatpush1.msra.mxu0 %v116
    %913 = vmatprep.subr.mxu0 %v121
    %914 = vmatpush1.msra.mxu0 %v120
    %915 = vmatprep.subr.mxu0 %v125
    %916 = vmatpush1.msra.mxu0 %v124
    %917 = vmatprep.subr.mxu0 %v129
    %918 = vmatpush1.msra.mxu0 %v128
    %919 = vmatprep.subr.mxu0 %v133
    %920 = vmatpush1.msra.mxu0 %v132
    %921 = vmatprep.subr.mxu0 %v137
    %922 = vmatpush1.msra.mxu0 %v136
    %923 = vmatprep.subr.mxu0 %v141
    %924 = vmatpush1.msra.mxu0 %v140
    %925 = vmatprep.subr.mxu0 %v145
    %926 = vmatpush1.msra.mxu0 %v144
    %927 = vmatprep.subr.mxu0 %v149
    %928 = vmatpush1.msra.mxu0 %v148
    %929 = vmatprep.subr.mxu0 %v153
    %930 = vmatpush1.msra.mxu0 %v152
    %931 = vmatprep.subr.mxu0 %v157
    %932 = vmatpush1.msra.mxu0 %v156
    %933 = vmatprep.subr.mxu0 %v161
    %934 = vmatpush1.msra.mxu0 %v160
    %935 = vmatprep.subr.mxu0 %v165
    %936 = vmatpush1.msra.mxu0 %v164
    %937 = vmatprep.subr.mxu0 %v169
    %938 = vmatpush1.msra.mxu0 %v168
    %939 = vmatprep.subr.mxu0 %v173
    %940 = vmatpush1.msra.mxu0 %v172
    %941 = vmatprep.subr.mxu0 %v177
    %942 = vmatpush1.msra.mxu0 %v176
    %943 = vmatprep.subr.mxu0 %v181
    %944 = vmatpush1.msra.mxu0 %v180
    %945 = vmatprep.subr.mxu0 %v185
    %946 = vmatpush1.msra.mxu0 %v184
    %947 = vmatprep.subr.mxu0 %v189
    %948 = vmatpush1.msra.mxu0 %v188
    %949 = vmatprep.subr.mxu0 %v193
    %950 = vmatpush1.msra.mxu0 %v192
    %951 = vmatprep.subr.mxu0 %v197
    %952 = vmatpush1.msra.mxu0 %v196
    %953 = vmatprep.subr.mxu0 %v201
    %954 = vmatpush1.msra.mxu0 %v200
    %955 = vmatprep.mubr.f32.mxu0 %v565
    %956 = vmatmul.mubr.f32.gmra.mrb[0].mxu0 %v557
    %v957 = vpop.f32.mrb[0].mxu0
    %v958 = vadd.f32 %v539, %v957
    %v959 = vpop.f32.mrb[0].mxu0
    %v960 = vadd.f32 %v543, %v959
    %961 = vdwg.mxu0
    %962 = vmatprep.subr.mxu0 %v205
    %963 = vmatpush1.msra.mxu0 %v204
    %964 = vmatprep.subr.mxu0 %v209
    %965 = vmatpush1.msra.mxu0 %v208
    %966 = vmatprep.subr.mxu0 %v213
    %967 = vmatpush1.msra.mxu0 %v212
    %968 = vmatprep.subr.mxu0 %v217
    %969 = vmatpush1.msra.mxu0 %v216
    %970 = vmatprep.subr.mxu0 %v221
    %971 = vmatpush1.msra.mxu0 %v220
    %972 = vmatprep.subr.mxu0 %v225
    %973 = vmatpush1.msra.mxu0 %v224
    %974 = vmatprep.subr.mxu0 %v229
    %975 = vmatpush1.msra.mxu0 %v228
    %976 = vmatprep.subr.mxu0 %v233
    %977 = vmatpush1.msra.mxu0 %v232
    %978 = vmatprep.subr.mxu0 %v237
    %979 = vmatpush1.msra.mxu0 %v236
    %980 = vmatprep.subr.mxu0 %v241
    %981 = vmatpush1.msra.mxu0 %v240
    %982 = vmatprep.subr.mxu0 %v245
    %983 = vmatpush1.msra.mxu0 %v244
    %984 = vmatprep.subr.mxu0 %v249
    %985 = vmatpush1.msra.mxu0 %v248
    %986 = vmatprep.subr.mxu0 %v253
    %987 = vmatpush1.msra.mxu0 %v252
    %988 = vmatprep.subr.mxu0 %v257
    %989 = vmatpush1.msra.mxu0 %v256
    %990 = vmatprep.subr.mxu0 %v261
    %991 = vmatpush1.msra.mxu0 %v260
    %992 = vmatprep.subr.mxu0 %v265
    %993 = vmatpush1.msra.mxu0 %v264
    %994 = vmatprep.subr.mxu0 %v269
    %995 = vmatpush1.msra.mxu0 %v268
    %996 = vmatprep.subr.mxu0 %v273
    %997 = vmatpush1.msra.mxu0 %v272
    %998 = vmatprep.subr.mxu0 %v277
    %999 = vmatpush1.msra.mxu0 %v276
    %1000 = vmatprep.subr.mxu0 %v281
    %1001 = vmatpush1.msra.mxu0 %v280
    %1002 = vmatprep.subr.mxu0 %v285
    %1003 = vmatpush1.msra.mxu0 %v284
    %1004 = vmatprep.subr.mxu0 %v289
    %1005 = vmatpush1.msra.mxu0 %v288
    %1006 = vmatprep.subr.mxu0 %v293
    %1007 = vmatpush1.msra.mxu0 %v292
    %1008 = vmatprep.subr.mxu0 %v297
    %1009 = vmatpush1.msra.mxu0 %v296
    %1010 = vmatprep.subr.mxu0 %v301
    %1011 = vmatpush1.msra.mxu0 %v300
    %1012 = vmatprep.subr.mxu0 %v305
    %1013 = vmatpush1.msra.mxu0 %v304
    %1014 = vmatprep.subr.mxu0 %v309
    %1015 = vmatpush1.msra.mxu0 %v308
    %1016 = vmatprep.subr.mxu0 %v313
    %1017 = vmatpush1.msra.mxu0 %v312
    %1018 = vmatprep.subr.mxu0 %v317
    %1019 = vmatpush1.msra.mxu0 %v316
    %1020 = vmatprep.subr.mxu0 %v321
    %1021 = vmatpush1.msra.mxu0 %v320
    %1022 = vmatprep.subr.mxu0 %v325
    %1023 = vmatpush1.msra.mxu0 %v324
    %1024 = vmatprep.subr.mxu0 %v329
    %1025 = vmatpush1.msra.mxu0 %v328
    %1026 = vmatprep.mubr.f32.mxu0 %v566
    %1027 = vmatmul.mubr.f32.gmra.mrb[0].mxu0 %v564
    %v1028 = vpop.f32.mrb[0].mxu0
    %v1029 = vadd.f32 %v958, %v1028
    %v1030 = vpop.f32.mrb[0].mxu0
    %v1031 = vadd.f32 %v960, %v1030
    %1032 = vdwg.mxu0
    %1033 = vmatprep.subr.mxu0 %v333
    %1034 = vmatpush1.msra.mxu0 %v332
    %1035 = vmatprep.subr.mxu0 %v337
    %1036 = vmatpush1.msra.mxu0 %v336
    %1037 = vmatprep.subr.mxu0 %v341
    %1038 = vmatpush1.msra.mxu0 %v340
    %1039 = vmatprep.subr.mxu0 %v345
    %1040 = vmatpush1.msra.mxu0 %v344
    %1041 = vmatprep.subr.mxu0 %v349
    %1042 = vmatpush1.msra.mxu0 %v348
    %1043 = vmatprep.subr.mxu0 %v353
    %1044 = vmatpush1.msra.mxu0 %v352
    %1045 = vmatprep.subr.mxu0 %v357
    %1046 = vmatpush1.msra.mxu0 %v356
    %1047 = vmatprep.subr.mxu0 %v361
    %1048 = vmatpush1.msra.mxu0 %v360
    %1049 = vmatprep.subr.mxu0 %v365
    %1050 = vmatpush1.msra.mxu0 %v364
    %1051 = vmatprep.subr.mxu0 %v369
    %1052 = vmatpush1.msra.mxu0 %v368
    %1053 = vmatprep.subr.mxu0 %v373
    %1054 = vmatpush1.msra.mxu0 %v372
    %1055 = vmatprep.subr.mxu0 %v377
    %1056 = vmatpush1.msra.mxu0 %v376
    %1057 = vmatprep.subr.mxu0 %v381
    %1058 = vmatpush1.msra.mxu0 %v380
    %1059 = vmatprep.subr.mxu0 %v385
    %1060 = vmatpush1.msra.mxu0 %v384
    %1061 = vmatprep.subr.mxu0 %v389
    %1062 = vmatpush1.msra.mxu0 %v388
    %1063 = vmatprep.subr.mxu0 %v393
    %1064 = vmatpush1.msra.mxu0 %v392
    %1065 = vmatprep.subr.mxu0 %v397
    %1066 = vmatpush1.msra.mxu0 %v396
    %1067 = vmatprep.subr.mxu0 %v401
    %1068 = vmatpush1.msra.mxu0 %v400
    %1069 = vmatprep.subr.mxu0 %v405
    %1070 = vmatpush1.msra.mxu0 %v404
    %1071 = vmatprep.subr.mxu0 %v409
    %1072 = vmatpush1.msra.mxu0 %v408
    %1073 = vmatprep.subr.mxu0 %v413
    %1074 = vmatpush1.msra.mxu0 %v412
    %1075 = vmatprep.subr.mxu0 %v417
    %1076 = vmatpush1.msra.mxu0 %v416
    %1077 = vmatprep.subr.mxu0 %v421
    %1078 = vmatpush1.msra.mxu0 %v420
    %1079 = vmatprep.subr.mxu0 %v425
    %1080 = vmatpush1.msra.mxu0 %v424
    %1081 = vmatprep.subr.mxu0 %v429
    %1082 = vmatpush1.msra.mxu0 %v428
    %1083 = vmatprep.subr.mxu0 %v433
    %1084 = vmatpush1.msra.mxu0 %v432
    %1085 = vmatprep.subr.mxu0 %v437
    %1086 = vmatpush1.msra.mxu0 %v436
    %1087 = vmatprep.subr.mxu0 %v441
    %1088 = vmatpush1.msra.mxu0 %v440
    %1089 = vmatprep.subr.mxu0 %v445
    %1090 = vmatpush1.msra.mxu0 %v444
    %1091 = vmatprep.subr.mxu0 %v449
    %1092 = vmatpush1.msra.mxu0 %v448
    %1093 = vmatprep.subr.mxu0 %v453
    %1094 = vmatpush1.msra.mxu0 %v452
    %1095 = vmatprep.subr.mxu0 %v457
    %1096 = vmatpush1.msra.mxu0 %v456
    %1097 = vmatprep.mubr.f32.mxu0 %v582
    %1098 = vmatmul.mubr.f32.gmra.mrb[0].mxu0 %v574
    %v1099 = vpop.f32.mrb[0].mxu0
    %v1100 = vadd.f32 %v1029, %v1099
    %v1101 = vpop.f32.mrb[0].mxu0
    %v1102 = vadd.f32 %v1031, %v1101
    %1103 = vdwg.mxu0
    %1104 = vmatprep.subr.mxu0 %v461
    %1105 = vmatpush1.msra.mxu0 %v460
    %1106 = vmatprep.subr.mxu0 %v465
    %1107 = vmatpush1.msra.mxu0 %v464
    %1108 = vmatprep.subr.mxu0 %v469
    %1109 = vmatpush1.msra.mxu0 %v468
    %1110 = vmatprep.subr.mxu0 %v473
    %1111 = vmatpush1.msra.mxu0 %v472
    %1112 = vmatprep.subr.mxu0 %v477
    %1113 = vmatpush1.msra.mxu0 %v476
    %1114 = vmatprep.subr.mxu0 %v481
    %1115 = vmatpush1.msra.mxu0 %v480
    %1116 = vmatprep.subr.mxu0 %v485
    %1117 = vmatpush1.msra.mxu0 %v484
    %1118 = vmatprep.subr.mxu0 %v489
    %1119 = vmatpush1.msra.mxu0 %v488
    %1120 = vmatprep.subr.mxu0 %v493
    %1121 = vmatpush1.msra.mxu0 %v492
    %1122 = vmatprep.subr.mxu0 %v497
    %1123 = vmatpush1.msra.mxu0 %v496
    %1124 = vmatprep.subr.mxu0 %v501
    %1125 = vmatpush1.msra.mxu0 %v500
    %1126 = vmatprep.subr.mxu0 %v505
    %1127 = vmatpush1.msra.mxu0 %v504
    %1128 = vmatprep.subr.mxu0 %v509
    %1129 = vmatpush1.msra.mxu0 %v508
    %1130 = vmatprep.subr.mxu0 %v513
    %1131 = vmatpush1.msra.mxu0 %v512
    %1132 = vmatprep.subr.mxu0 %v517
    %1133 = vmatpush1.msra.mxu0 %v516
    %1134 = vmatprep.subr.mxu0 %v521
    %1135 = vmatpush1.msra.mxu0 %v520
    %1136 = vmatprep.subr.mxu0 %v605
    %1137 = vmatpush1.msra.mxu0 %v602
    %1138 = vmatprep.subr.mxu0 0.0
    %1139 = vmatpush1.msra.mxu0 0.0
    %1140 = vmatprep.subr.mxu0 0.0
    %1141 = vmatpush1.msra.mxu0 0.0
    %1142 = vmatprep.subr.mxu0 0.0
    %1143 = vmatpush1.msra.mxu0 0.0
    %1144 = vmatprep.subr.mxu0 0.0
    %1145 = vmatpush1.msra.mxu0 0.0
    %1146 = vmatprep.subr.mxu0 0.0
    %1147 = vmatpush1.msra.mxu0 0.0
    %1148 = vmatprep.subr.mxu0 0.0
    %1149 = vmatpush1.msra.mxu0 0.0
    %1150 = vmatprep.subr.mxu0 0.0
    %1151 = vmatpush1.msra.mxu0 0.0
    %1152 = vmatprep.subr.mxu0 0.0
    %1153 = vmatpush1.msra.mxu0 0.0
    %1154 = vmatprep.subr.mxu0 0.0
    %1155 = vmatpush1.msra.mxu0 0.0
    %1156 = vmatprep.subr.mxu0 0.0
    %1157 = vmatpush1.msra.mxu0 0.0
    %1158 = vmatprep.subr.mxu0 0.0
    %1159 = vmatpush1.msra.mxu0 0.0
    %1160 = vmatprep.subr.mxu0 0.0
    %1161 = vmatpush1.msra.mxu0 0.0
    %1162 = vmatprep.subr.mxu0 0.0
    %1163 = vmatpush1.msra.mxu0 0.0
    %1164 = vmatprep.subr.mxu0 0.0
    %1165 = vmatpush1.msra.mxu0 0.0
    %1166 = vmatprep.subr.mxu0 0.0
    %1167 = vmatpush1.msra.mxu0 0.0
    %1168 = vmatprep.mubr.f32.mxu0 %v592
    %1169 = vmatmul.mubr.f32.gmra.mrb[0].mxu0 %v581
    %v1170 = vpop.f32.mrb[0].mxu0
    %v1171 = vadd.f32 %v1100, %v1170
    %v1172 = vpop.f32.mrb[0].mxu0
    %v1173 = vadd.f32 %v1102, %v1172
    %1174 = vdwg.mxu0
    %v1175 = vmax.f32 %v887, 0.0
    %v1176 = vmax.f32 %v889, 0.0
    %v1177 = vmax.f32 %v1171, 0.0
    %v1178 = vmax.f32 %v1173, 0.0
    %v1179 = vld [vmem:[#allocation7] sm:$0xff]
    %v1180 = vld [vmem:[#allocation7 + $0x8] sm:$0xff]
    %v1181 = vld [vmem:[#allocation7 + $0x10] sm:$0xff]
    %v1182 = vld [vmem:[#allocation7 + $0x18] sm:$0xff]
    %v1183 = vld [vmem:[#allocation7 + $0x20] sm:$0xff]
    %v1184 = vld [vmem:[#allocation7 + $0x28] sm:$0xff]
    %v1185 = vld [vmem:[#allocation7 + $0x30] sm:$0xff]
    %v1186 = vld [vmem:[#allocation7 + $0x38] sm:$0xff]
    %v1187 = vld [vmem:[#allocation7 + $0x40] sm:$0xff]
    %v1188 = vld [vmem:[#allocation7 + $0x48] sm:$0xff]
    %v1189 = vld [vmem:[#allocation7 + $0x50] sm:$0xff]
    %v1190 = vld [vmem:[#allocation7 + $0x58] sm:$0xff]
    %v1191 = vld [vmem:[#allocation7 + $0x60] sm:$0xff]
    %v1192 = vld [vmem:[#allocation7 + $0x68] sm:$0xff]
    %v1193 = vld [vmem:[#allocation7 + $0x70] sm:$0xff]
    %v1194 = vld [vmem:[#allocation7 + $0x78] sm:$0xff]
    %v1195 = vld [vmem:[#allocation7 + $0x80] sm:$0xff]
    %v1196 = vld [vmem:[#allocation7 + $0x88] sm:$0xff]
    %v1197 = vld [vmem:[#allocation7 + $0x90] sm:$0xff]
    %v1198 = vld [vmem:[#allocation7 + $0x98] sm:$0xff]
    %v1199 = vld [vmem:[#allocation7 + $0xa0] sm:$0xff]
    %v1200 = vld [vmem:[#allocation7 + $0xa8] sm:$0xff]
    %v1201 = vld [vmem:[#allocation7 + $0xb0] sm:$0xff]
    %v1202 = vld [vmem:[#allocation7 + $0xb8] sm:$0xff]
    %v1203 = vld [vmem:[#allocation7 + $0xc0] sm:$0xff]
    %v1204 = vld [vmem:[#allocation7 + $0xc8] sm:$0xff]
    %v1205 = vld [vmem:[#allocation7 + $0xd0] sm:$0xff]
    %v1206 = vld [vmem:[#allocation7 + $0xd8] sm:$0xff]
    %v1207 = vld [vmem:[#allocation7 + $0xe0] sm:$0xff]
    %v1208 = vld [vmem:[#allocation7 + $0xe8] sm:$0xff]
    %v1209 = vld [vmem:[#allocation7 + $0xf0] sm:$0xff]
    %v1210 = vld [vmem:[#allocation7 + $0xf8] sm:$0xff]
    %v1211 = vld [vmem:[#allocation7 + $0x100] sm:$0xff]
    %v1212 = vld [vmem:[#allocation7 + $0x108] sm:$0xff]
    %v1213 = vld [vmem:[#allocation7 + $0x110] sm:$0xff]
    %v1214 = vld [vmem:[#allocation7 + $0x118] sm:$0xff]
    %v1215 = vld [vmem:[#allocation7 + $0x120] sm:$0xff]
    %v1216 = vld [vmem:[#allocation7 + $0x128] sm:$0xff]
    %v1217 = vld [vmem:[#allocation7 + $0x130] sm:$0xff]
    %v1218 = vld [vmem:[#allocation7 + $0x138] sm:$0xff]
    %v1219 = vld [vmem:[#allocation7 + $0x140] sm:$0xff]
    %v1220 = vld [vmem:[#allocation7 + $0x148] sm:$0xff]
    %v1221 = vld [vmem:[#allocation7 + $0x150] sm:$0xff]
    %v1222 = vld [vmem:[#allocation7 + $0x158] sm:$0xff]
    %v1223 = vld [vmem:[#allocation7 + $0x160] sm:$0xff]
    %v1224 = vld [vmem:[#allocation7 + $0x168] sm:$0xff]
    %v1225 = vld [vmem:[#allocation7 + $0x170] sm:$0xff]
    %v1226 = vld [vmem:[#allocation7 + $0x178] sm:$0xff]
    %v1227 = vld [vmem:[#allocation7 + $0x180] sm:$0xff]
    %v1228 = vld [vmem:[#allocation7 + $0x188] sm:$0xff]
    %v1229 = vld [vmem:[#allocation7 + $0x190] sm:$0xff]
    %v1230 = vld [vmem:[#allocation7 + $0x198] sm:$0xff]
    %v1231 = vld [vmem:[#allocation7 + $0x1a0] sm:$0xff]
    %v1232 = vld [vmem:[#allocation7 + $0x1a8] sm:$0xff]
    %v1233 = vld [vmem:[#allocation7 + $0x1b0] sm:$0xff]
    %v1234 = vld [vmem:[#allocation7 + $0x1b8] sm:$0xff]
    %v1235 = vld [vmem:[#allocation7 + $0x1c0] sm:$0xff]
    %v1236 = vld [vmem:[#allocation7 + $0x1c8] sm:$0xff]
    %v1237 = vld [vmem:[#allocation7 + $0x1d0] sm:$0xff]
    %v1238 = vld [vmem:[#allocation7 + $0x1d8] sm:$0xff]
    %v1239 = vld [vmem:[#allocation7 + $0x1e0] sm:$0xff]
    %v1240 = vld [vmem:[#allocation7 + $0x1e8] sm:$0xff]
    %v1241 = vld [vmem:[#allocation7 + $0x1f0] sm:$0xff]
    %v1242 = vld [vmem:[#allocation7 + $0x1f8] sm:$0xff]
    %v1243 = vld [vmem:[#allocation8] sm:$0x1]
    %v1245 = vlaneseq
    %v1246 = vshrl.u32 %v1245, 7
    %v1247 = vsub.s32 0, %v1246
    %v1248 = vrot.slane %v1243, %v1247
    %1250 = vmatprep.subr.mxu0 0.0
    %1251 = vmatpush1.msra.mxu0 %v1179
    %1252 = vmatprep.subr.mxu0 0.0
    %1253 = vmatpush1.msra.mxu0 %v1180
    %1254 = vmatprep.subr.mxu0 0.0
    %1255 = vmatpush1.msra.mxu0 %v1181
    %1256 = vmatprep.subr.mxu0 0.0
    %1257 = vmatpush1.msra.mxu0 %v1182
    %1258 = vmatprep.subr.mxu0 0.0
    %1259 = vmatpush1.msra.mxu0 %v1183
    %1260 = vmatprep.subr.mxu0 0.0
    %1261 = vmatpush1.msra.mxu0 %v1184
    %1262 = vmatprep.subr.mxu0 0.0
    %1263 = vmatpush1.msra.mxu0 %v1185
    %1264 = vmatprep.subr.mxu0 0.0
    %1265 = vmatpush1.msra.mxu0 %v1186
    %1266 = vmatprep.subr.mxu0 0.0
    %1267 = vmatpush1.msra.mxu0 %v1187
    %1268 = vmatprep.subr.mxu0 0.0
    %1269 = vmatpush1.msra.mxu0 %v1188
    %1270 = vmatprep.subr.mxu0 0.0
    %1271 = vmatpush1.msra.mxu0 %v1189
    %1272 = vmatprep.subr.mxu0 0.0
    %1273 = vmatpush1.msra.mxu0 %v1190
    %1274 = vmatprep.subr.mxu0 0.0
    %1275 = vmatpush1.msra.mxu0 %v1191
    %1276 = vmatprep.subr.mxu0 0.0
    %1277 = vmatpush1.msra.mxu0 %v1192
    %1278 = vmatprep.subr.mxu0 0.0
    %1279 = vmatpush1.msra.mxu0 %v1193
    %1280 = vmatprep.subr.mxu0 0.0
    %1281 = vmatpush1.msra.mxu0 %v1194
    %1282 = vmatprep.subr.mxu0 0.0
    %1283 = vmatpush1.msra.mxu0 %v1195
    %1284 = vmatprep.subr.mxu0 0.0
    %1285 = vmatpush1.msra.mxu0 %v1196
    %1286 = vmatprep.subr.mxu0 0.0
    %1287 = vmatpush1.msra.mxu0 %v1197
    %1288 = vmatprep.subr.mxu0 0.0
    %1289 = vmatpush1.msra.mxu0 %v1198
    %1290 = vmatprep.subr.mxu0 0.0
    %1291 = vmatpush1.msra.mxu0 %v1199
    %1292 = vmatprep.subr.mxu0 0.0
    %1293 = vmatpush1.msra.mxu0 %v1200
    %1294 = vmatprep.subr.mxu0 0.0
    %1295 = vmatpush1.msra.mxu0 %v1201
    %1296 = vmatprep.subr.mxu0 0.0
    %1297 = vmatpush1.msra.mxu0 %v1202
    %1298 = vmatprep.subr.mxu0 0.0
    %1299 = vmatpush1.msra.mxu0 %v1203
    %1300 = vmatprep.subr.mxu0 0.0
    %1301 = vmatpush1.msra.mxu0 %v1204
    %1302 = vmatprep.subr.mxu0 0.0
    %1303 = vmatpush1.msra.mxu0 %v1205
    %1304 = vmatprep.subr.mxu0 0.0
    %1305 = vmatpush1.msra.mxu0 %v1206
    %1306 = vmatprep.subr.mxu0 0.0
    %1307 = vmatpush1.msra.mxu0 %v1207
    %1308 = vmatprep.subr.mxu0 0.0
    %1309 = vmatpush1.msra.mxu0 %v1208
    %1310 = vmatprep.subr.mxu0 0.0
    %1311 = vmatpush1.msra.mxu0 %v1209
    %1312 = vmatprep.subr.mxu0 0.0
    %1313 = vmatpush1.msra.mxu0 %v1210
    %1314 = vmatprep.mubr.f32.mxu0 %v1176
    %1315 = vmatmul.mubr.f32.gmra.mrb[0].mxu0 %v1175
    %v1316 = vpop.f32.mrb[0].mxu0
    %v1317 = vadd.f32 %v1248, %v1316
    %v1318 = vpop.f32.mrb[0].mxu0
    %1319 = vdwg.mxu0
    %1320 = vmatprep.subr.mxu0 0.0
    %1321 = vmatpush1.msra.mxu0 %v1211
    %1322 = vmatprep.subr.mxu0 0.0
    %1323 = vmatpush1.msra.mxu0 %v1212
    %1324 = vmatprep.subr.mxu0 0.0
    %1325 = vmatpush1.msra.mxu0 %v1213
    %1326 = vmatprep.subr.mxu0 0.0
    %1327 = vmatpush1.msra.mxu0 %v1214
    %1328 = vmatprep.subr.mxu0 0.0
    %1329 = vmatpush1.msra.mxu0 %v1215
    %1330 = vmatprep.subr.mxu0 0.0
    %1331 = vmatpush1.msra.mxu0 %v1216
    %1332 = vmatprep.subr.mxu0 0.0
    %1333 = vmatpush1.msra.mxu0 %v1217
    %1334 = vmatprep.subr.mxu0 0.0
    %1335 = vmatpush1.msra.mxu0 %v1218
    %1336 = vmatprep.subr.mxu0 0.0
    %1337 = vmatpush1.msra.mxu0 %v1219
    %1338 = vmatprep.subr.mxu0 0.0
    %1339 = vmatpush1.msra.mxu0 %v1220
    %1340 = vmatprep.subr.mxu0 0.0
    %1341 = vmatpush1.msra.mxu0 %v1221
    %1342 = vmatprep.subr.mxu0 0.0
    %1343 = vmatpush1.msra.mxu0 %v1222
    %1344 = vmatprep.subr.mxu0 0.0
    %1345 = vmatpush1.msra.mxu0 %v1223
    %1346 = vmatprep.subr.mxu0 0.0
    %1347 = vmatpush1.msra.mxu0 %v1224
    %1348 = vmatprep.subr.mxu0 0.0
    %1349 = vmatpush1.msra.mxu0 %v1225
    %1350 = vmatprep.subr.mxu0 0.0
    %1351 = vmatpush1.msra.mxu0 %v1226
    %1352 = vmatprep.subr.mxu0 0.0
    %1353 = vmatpush1.msra.mxu0 %v1227
    %1354 = vmatprep.subr.mxu0 0.0
    %1355 = vmatpush1.msra.mxu0 %v1228
    %1356 = vmatprep.subr.mxu0 0.0
    %1357 = vmatpush1.msra.mxu0 %v1229
    %1358 = vmatprep.subr.mxu0 0.0
    %1359 = vmatpush1.msra.mxu0 %v1230
    %1360 = vmatprep.subr.mxu0 0.0
    %1361 = vmatpush1.msra.mxu0 %v1231
    %1362 = vmatprep.subr.mxu0 0.0
    %1363 = vmatpush1.msra.mxu0 %v1232
    %1364 = vmatprep.subr.mxu0 0.0
    %1365 = vmatpush1.msra.mxu0 %v1233
    %1366 = vmatprep.subr.mxu0 0.0
    %1367 = vmatpush1.msra.mxu0 %v1234
    %1368 = vmatprep.subr.mxu0 0.0
    %1369 = vmatpush1.msra.mxu0 %v1235
    %1370 = vmatprep.subr.mxu0 0.0
    %1371 = vmatpush1.msra.mxu0 %v1236
    %1372 = vmatprep.subr.mxu0 0.0
    %1373 = vmatpush1.msra.mxu0 %v1237
    %1374 = vmatprep.subr.mxu0 0.0
    %1375 = vmatpush1.msra.mxu0 %v1238
    %1376 = vmatprep.subr.mxu0 0.0
    %1377 = vmatpush1.msra.mxu0 %v1239
    %1378 = vmatprep.subr.mxu0 0.0
    %1379 = vmatpush1.msra.mxu0 %v1240
    %1380 = vmatprep.subr.mxu0 0.0
    %1381 = vmatpush1.msra.mxu0 %v1241
    %1382 = vmatprep.subr.mxu0 0.0
    %1383 = vmatpush1.msra.mxu0 %v1242
    %1384 = vmatprep.mubr.f32.mxu0 %v1178
    %1385 = vmatmul.mubr.f32.gmra.mrb[0].mxu0 %v1177
    %v1386 = vpop.f32.mrb[0].mxu0
    %v1387 = vadd.f32 %v1317, %v1386
    %v1388 = vpop.f32.mrb[0].mxu0
    %1389 = vdwg.mxu0
    %1390 = vst [vmem:[#allocation10] sm:$0x3] %v1387
    // Predicated region
    $region38: #{_fused_forward.1} parent=1 // pred_check
      _
    $region39: #{_fused_forward.1} parent=1 // pred_check_branch
      %1392 = sbr.rel (0) target = $region41
    $region40: #{_fused_forward.1} parent=1 // pred_region
      %s1394 = ssub.s32 32, 32
      %1395 = vsyncadd [#allocation4], %s1394
      %s1397 = sshll.u32 [#allocation10], 4
      %s1398 = int_to_ptr.vmem [resolvable:$true] %s1397
      %1400 = dma.vmem_to_hbm [thread:$0]  %s1398, 32, %s5, [#allocation4]
    $region41: #{_fused_forward.1} parent=1 // pred_fallthru
      _
    // Predicated region
    $region42: #{_fused_forward.1} parent=1 // pred_check
      _
    $region43: #{_fused_forward.1} parent=1 // pred_check_branch
      %1402 = sbr.rel (0) target = $region45
    $region44: #{_fused_forward.1} parent=1 // pred_region
      %1403 = dma.done [#allocation4], 32
    $region45: #{_fused_forward.1} parent=1 // pred_fallthru
      _
    %1404 = vsyncpa [#allocation3], 1
    %1405 = vsyncpa [#allocation6], 1
    %1406 = vsyncpa [#allocation9], 1
    %1407 = vsyncpa [#allocation4], 1

</llo_original>
